<compile_context>
chip_gen: v5e
topology: v5e:2x2
jax: 0.10.0
libtpu: 0.0.40
codegen_flags: <defaults>
</compile_context>

<pallas_src>
import functools

import jax
import jax.numpy as jnp
from jax import lax
from jax.experimental import pallas as pl
from jax.experimental.pallas import tpu as pltpu


def _pick_q_tile(hw):
    """Largest q-tile (multiple of 128, <=512) that divides HW; else the full HW."""
    if hw % 128 == 0:
        for t in (512, 384, 256, 128):
            if hw % t == 0:
                return t
    return hw


def attn_block_kernel(x_ref, p_ref, gamma_ref, beta_ref,
                      wqkv_ref, bqkv_ref, wp_ref, bp_ref,
                      o_ref, qT_ref, kv_ref, *, eps, group_size, c, tq):
    hw = x_ref.shape[2]
    qi = pl.program_id(1)

    # ---- per-batch producer: GroupNorm + fused q/k/v 1x1 conv (runs on the first q-tile) ----
    @pl.when(qi == 0)
    def _():
        x = x_ref[0]                                          # (C, HW) fp32
        denom = float(group_size * hw)
        # per-group stats via same-group 0/1 mask matmul (two-pass / centered variance)
        s = jnp.sum(x, axis=1, keepdims=True)                 # (C, 1)
        mean = jnp.dot(p_ref[...], s, preferred_element_type=jnp.float32) / denom
        xc = x - mean
        sq = jnp.sum(xc * xc, axis=1, keepdims=True)          # (C, 1)
        var = jnp.dot(p_ref[...], sq, preferred_element_type=jnp.float32) / denom
        inv_std = lax.rsqrt(var + eps)
        h = xc * (inv_std * gamma_ref[...]) + beta_ref[...]   # (C, HW) fp32

        # fused q/k/v: (3C, C) @ (C, HW), bf16 operands on the MXU, fp32 accumulation
        qkv = jnp.dot(wqkv_ref[...], h.astype(jnp.bfloat16),
                      preferred_element_type=jnp.float32) + bqkv_ref[...]
        # store q transposed ONCE per batch so per-tile score matmuls are natural (M,K)x(K,N)
        qT_ref[...] = jnp.transpose(qkv[0:c, :]).astype(jnp.bfloat16)      # (HW, C)
        kv_ref[...] = qkv[c:3 * c, :].astype(jnp.bfloat16)                 # (2C, HW)

    # ---- per q-tile: attention + proj_out + residual ----
    qoff = pl.multiple_of(qi * tq, tq)
    q_t = qT_ref[pl.ds(qoff, tq), :]                          # (TQ, C) bf16 (scale folded)
    k = kv_ref[0:c, :]                                        # (C, HW) bf16
    v = kv_ref[c:2 * c, :]                                    # (C, HW) bf16

    scores = jnp.dot(q_t, k, preferred_element_type=jnp.float32)          # (TQ, HW) fp32
    m = jnp.max(scores, axis=1, keepdims=True)
    pexp = jnp.exp(scores - m)
    l = jnp.sum(pexp, axis=1, keepdims=True)                  # (TQ, 1)
    p_bf = (pexp * (1.0 / l)).astype(jnp.bfloat16)            # normalized probs for MXU

    # attn[c, t] = sum_j v[c, j] * p[t, j]  -> stays in channel-major (C, TQ) layout
    attn = lax.dot_general(v, p_bf, dimension_numbers=(((1,), (1,)), ((), ())),
                           preferred_element_type=jnp.float32)            # (C, TQ)

    proj = jnp.dot(wp_ref[...], attn.astype(jnp.bfloat16),
                   preferred_element_type=jnp.float32) + bp_ref[...]      # (C, TQ)

    o_ref[0] = x_ref[0, :, pl.ds(qoff, tq)] + proj


def attn_block(x_nchw, params, *, num_groups, eps=1e-6):
    b, c, h, w = x_nchw.shape
    hw = h * w
    cg = c // num_groups
    tq = _pick_q_tile(hw)
    nq = hw // tq
    scale = float(c) ** (-0.5)

    # free reshape only — no transpose, no channel padding, no post-slice
    x = x_nchw.reshape(b, c, hw).astype(jnp.float32)

    gid = jnp.arange(c) // cg
    p_mat = (gid[:, None] == gid[None, :]).astype(jnp.float32)            # (C, C)

    def w2d(wgt):
        return wgt.reshape(c, c).astype(jnp.float32)                      # (out, in)

    gamma = params["gamma"].reshape(c, 1).astype(jnp.float32)
    beta = params["beta"].reshape(c, 1).astype(jnp.float32)

    # fused qkv weight (bf16), attention scale 1/sqrt(C) folded into the q rows / q bias
    wqkv = jnp.concatenate(
        [w2d(params["wq"]) * scale, w2d(params["wk"]), w2d(params["wv"])],
        axis=0).astype(jnp.bfloat16)                                      # (3C, C)
    bqkv = jnp.concatenate(
        [params["bq"] * scale, params["bk"], params["bv"]],
        axis=0).reshape(3 * c, 1).astype(jnp.float32)                     # (3C, 1)
    wp = w2d(params["wp"]).astype(jnp.bfloat16)                           # (C, C)
    bp = params["bp"].reshape(c, 1).astype(jnp.float32)                   # (C, 1)

    # generation-aware VMEM limit (v7x: 64 MiB physical per TC -> ~48 MiB; v5e/v6e -> ~96 MiB)
    try:
        vmem_cap = int(pltpu.get_tpu_info().vmem_capacity_bytes)
    except Exception:
        vmem_cap = 64 * 1024 * 1024
    vmem_limit = max(32 * 1024 * 1024,
                     min(3 * vmem_cap // 4, vmem_cap - 16 * 1024 * 1024))

    kernel = functools.partial(attn_block_kernel, eps=eps, group_size=cg, c=c, tq=tq)

    out = pl.pallas_call(
        kernel,
        out_shape=jax.ShapeDtypeStruct((b, c, hw), jnp.float32),
        grid=(b, nq),
        in_specs=[
            pl.BlockSpec((1, c, hw), lambda i, j: (i, 0, 0)),     # x (constant along q axis)
            pl.BlockSpec((c, c), lambda i, j: (0, 0)),            # same-group mask
            pl.BlockSpec((c, 1), lambda i, j: (0, 0)),            # gamma
            pl.BlockSpec((c, 1), lambda i, j: (0, 0)),            # beta
            pl.BlockSpec((3 * c, c), lambda i, j: (0, 0)),        # fused Wqkv (bf16)
            pl.BlockSpec((3 * c, 1), lambda i, j: (0, 0)),        # fused bqkv
            pl.BlockSpec((c, c), lambda i, j: (0, 0)),            # Wp (bf16)
            pl.BlockSpec((c, 1), lambda i, j: (0, 0)),            # bp
        ],
        out_specs=pl.BlockSpec((1, c, tq), lambda i, j: (i, 0, j)),
        scratch_shapes=[
            pltpu.VMEM((hw, c), jnp.bfloat16),        # q, transposed, scale folded
            pltpu.VMEM((2 * c, hw), jnp.bfloat16),    # k / v stacked
        ],
        compiler_params=pltpu.CompilerParams(
            dimension_semantics=("parallel", "arbitrary"),
            vmem_limit_bytes=int(vmem_limit)),
    )(x, p_mat, gamma, beta, wqkv, bqkv, wp, bp)

    return out.reshape(b, c, h, w)        # free reshape back to NCHW


def reference_attn_block(x, params, *, num_groups, eps=1e-6):
    """Pure-JAX fp32 reference matching the PyTorch forward (NCHW)."""
    b, c, h, w = x.shape
    cg = c // num_groups
    xr = x.reshape(b, num_groups, cg, h, w)
    mean = jnp.mean(xr, axis=(2, 3, 4), keepdims=True)
    var = jnp.mean((xr - mean) ** 2, axis=(2, 3, 4), keepdims=True)
    hn = ((xr - mean) / jnp.sqrt(var + eps)).reshape(b, c, h, w)
    hn = hn * params["gamma"].reshape(1, c, 1, 1) + params["beta"].reshape(1, c, 1, 1)

    def conv1x1(t, wgt, bias):
        return jnp.einsum("bchw,oc->bohw", t, wgt.reshape(c, c)) + bias.reshape(1, c, 1, 1)

    q = conv1x1(hn, params["wq"], params["bq"])
    k = conv1x1(hn, params["wk"], params["bk"])
    v = conv1x1(hn, params["wv"], params["bv"])
    q = q.reshape(b, c, h * w).transpose(0, 2, 1)      # (b, hw, c)
    k = k.reshape(b, c, h * w)                         # (b, c, hw)
    w_ = jnp.einsum("bqc,bck->bqk", q, k) * (c ** -0.5)
    w_ = jax.nn.softmax(w_, axis=2)
    v = v.reshape(b, c, h * w)
    out = jnp.einsum("bck,bqk->bcq", v, w_).reshape(b, c, h, w)
    out = conv1x1(out, params["wp"], params["bp"])
    return x + out


if __name__ == "__main__":
    key = jax.random.PRNGKey(0)
    B, C, H, W = 2, 32, 16, 16                    # in_channels=32 -> num_groups=8
    num_groups = C // 4 if C <= 32 else 32

    keys = jax.random.split(key, 11)
    x = jax.random.normal(keys[0], (B, C, H, W), dtype=jnp.float32)

    def winit(k):
        return jax.random.normal(k, (C, C, 1, 1), dtype=jnp.float32) * (1.0 / jnp.sqrt(C))

    params = {
        "gamma": 1.0 + 0.1 * jax.random.normal(keys[1], (C,), dtype=jnp.float32),
        "beta": 0.1 * jax.random.normal(keys[2], (C,), dtype=jnp.float32),
        "wq": winit(keys[3]), "bq": 0.01 * jax.random.normal(keys[4], (C,), dtype=jnp.float32),
        "wk": winit(keys[5]), "bk": 0.01 * jax.random.normal(keys[6], (C,), dtype=jnp.float32),
        "wv": winit(keys[7]), "bv": 0.01 * jax.random.normal(keys[8], (C,), dtype=jnp.float32),
        "wp": winit(keys[9]), "bp": 0.01 * jax.random.normal(keys[10], (C,), dtype=jnp.float32),
    }

    out = attn_block(x, params, num_groups=num_groups)
    out = jax.block_until_ready(out)

    ref = jax.block_until_ready(reference_attn_block(x, params, num_groups=num_groups))
    assert out.shape == (B, C, H, W)
    max_err = float(jnp.max(jnp.abs(out - ref)))
    # bf16 MXU operands (fp32 accumulation) => looser tolerance than a pure-fp32 kernel
    assert jnp.allclose(out, ref, atol=5e-2, rtol=5e-2), max_err

    print("KERNEL_OK")
</pallas_src>

<mosaic_0001>
module attributes {stable_mosaic.version = 11 : i64} {
  func.func @attn_block_kernel(%arg0: i32, %arg1: i32, %arg2: memref<1x32x256xf32, #tpu.memory_space<vmem>>, %arg3: memref<32x32xf32, #tpu.memory_space<vmem>>, %arg4: memref<32x1xf32, #tpu.memory_space<vmem>>, %arg5: memref<32x1xf32, #tpu.memory_space<vmem>>, %arg6: memref<96x32xbf16, #tpu.memory_space<vmem>>, %arg7: memref<96x1xf32, #tpu.memory_space<vmem>>, %arg8: memref<32x32xbf16, #tpu.memory_space<vmem>>, %arg9: memref<32x1xf32, #tpu.memory_space<vmem>>, %arg10: memref<1x32x256xf32, #tpu.memory_space<vmem>>, %arg11: memref<256x32xbf16, #tpu.memory_space<vmem>>, %arg12: memref<64x256xbf16, #tpu.memory_space<vmem>>) attributes {dimension_semantics = [#tpu.dimension_semantics<parallel>, #tpu.dimension_semantics<arbitrary>], iteration_bounds = array<i64: 2, 1>, scalar_prefetch = 0 : i64, scratch_operands = 2 : i64, tpu.core_type = #tpu.core_type<tc>, window_params = [{transform_indices = @transform_0, window_bounds = array<i64: 1, 32, 256>}, {pipeline_mode = #tpu.pipeline_mode<synchronous>, transform_indices = @transform_1, window_bounds = array<i64: 32, 32>}, {pipeline_mode = #tpu.pipeline_mode<synchronous>, transform_indices = @transform_2, window_bounds = array<i64: 32, 1>}, {pipeline_mode = #tpu.pipeline_mode<synchronous>, transform_indices = @transform_3, window_bounds = array<i64: 32, 1>}, {pipeline_mode = #tpu.pipeline_mode<synchronous>, transform_indices = @transform_4, window_bounds = array<i64: 96, 32>}, {pipeline_mode = #tpu.pipeline_mode<synchronous>, transform_indices = @transform_5, window_bounds = array<i64: 96, 1>}, {pipeline_mode = #tpu.pipeline_mode<synchronous>, transform_indices = @transform_6, window_bounds = array<i64: 32, 32>}, {pipeline_mode = #tpu.pipeline_mode<synchronous>, transform_indices = @transform_7, window_bounds = array<i64: 32, 1>}, {transform_indices = @transform_8, window_bounds = array<i64: 1, 32, 256>}]} {
    %c0_i32 = arith.constant 0 : i32
    %0 = arith.cmpi eq, %arg1, %c0_i32 : i32
    %1 = arith.extui %0 : i1 to i32
    %c0_i32_0 = arith.constant 0 : i32
    %2 = arith.cmpi ne, %1, %c0_i32_0 : i32
    scf.if %2 {
      %c0_18 = arith.constant 0 : index
      %c0_19 = arith.constant 0 : index
      %c0_20 = arith.constant 0 : index
      %36 = vector.load %arg2[%c0_18, %c0_19, %c0_20] : memref<1x32x256xf32, #tpu.memory_space<vmem>>, vector<1x32x256xf32>
      %37 = vector.shape_cast %36 : vector<1x32x256xf32> to vector<32x256xf32>
      %cst_21 = arith.constant dense<0.000000e+00> : vector<32xf32>
      %38 = vector.multi_reduction <add>, %37, %cst_21 [1] : vector<32x256xf32> to vector<32xf32>
      %39 = vector.shape_cast %38 : vector<32xf32> to vector<32x1xf32>
      %c0_22 = arith.constant 0 : index
      %c0_23 = arith.constant 0 : index
      %40 = vector.load %arg3[%c0_22, %c0_23] : memref<32x32xf32, #tpu.memory_space<vmem>>, vector<32x32xf32>
      %cst_24 = arith.constant dense<0.000000e+00> : vector<32x1xf32>
      %41 = tpu.matmul %40, %39, %cst_24 {dimension_numbers = #tpu.dot_dimension_numbers<[1], [0], [0], [1], [0, 0, 1, 1], [], []>} : vector<32x32xf32>, vector<32x1xf32>, vector<32x1xf32> -> vector<32x1xf32>
      %cst_25 = arith.constant 1.024000e+03 : f32
      %42 = vector.broadcast %cst_25 : f32 to vector<32x1xf32>
      %43 = arith.divf %41, %42 : vector<32x1xf32>
      %44 = vector.broadcast %43 : vector<32x1xf32> to vector<32x256xf32>
      %45 = arith.subf %37, %44 : vector<32x256xf32>
      %46 = arith.mulf %45, %45 : vector<32x256xf32>
      %cst_26 = arith.constant dense<0.000000e+00> : vector<32xf32>
      %47 = vector.multi_reduction <add>, %46, %cst_26 [1] : vector<32x256xf32> to vector<32xf32>
      %48 = vector.shape_cast %47 : vector<32xf32> to vector<32x1xf32>
      %c0_27 = arith.constant 0 : index
      %c0_28 = arith.constant 0 : index
      %49 = vector.load %arg3[%c0_27, %c0_28] : memref<32x32xf32, #tpu.memory_space<vmem>>, vector<32x32xf32>
      %cst_29 = arith.constant dense<0.000000e+00> : vector<32x1xf32>
      %50 = tpu.matmul %49, %48, %cst_29 {dimension_numbers = #tpu.dot_dimension_numbers<[1], [0], [0], [1], [0, 0, 1, 1], [], []>} : vector<32x32xf32>, vector<32x1xf32>, vector<32x1xf32> -> vector<32x1xf32>
      %cst_30 = arith.constant 1.024000e+03 : f32
      %51 = vector.broadcast %cst_30 : f32 to vector<32x1xf32>
      %52 = arith.divf %50, %51 : vector<32x1xf32>
      %cst_31 = arith.constant 9.99999997E-7 : f32
      %53 = vector.broadcast %cst_31 : f32 to vector<32x1xf32>
      %54 = arith.addf %52, %53 : vector<32x1xf32>
      %55 = math.rsqrt %54 : vector<32x1xf32>
      %c0_32 = arith.constant 0 : index
      %c0_33 = arith.constant 0 : index
      %56 = vector.load %arg4[%c0_32, %c0_33] : memref<32x1xf32, #tpu.memory_space<vmem>>, vector<32x1xf32>
      %57 = arith.mulf %55, %56 : vector<32x1xf32>
      %58 = vector.broadcast %57 : vector<32x1xf32> to vector<32x256xf32>
      %59 = arith.mulf %45, %58 : vector<32x256xf32>
      %c0_34 = arith.constant 0 : index
      %c0_35 = arith.constant 0 : index
      %60 = vector.load %arg5[%c0_34, %c0_35] : memref<32x1xf32, #tpu.memory_space<vmem>>, vector<32x1xf32>
      %61 = vector.broadcast %60 : vector<32x1xf32> to vector<32x256xf32>
      %62 = arith.addf %59, %61 : vector<32x256xf32>
      %c0_36 = arith.constant 0 : index
      %c0_37 = arith.constant 0 : index
      %63 = vector.load %arg6[%c0_36, %c0_37] : memref<96x32xbf16, #tpu.memory_space<vmem>>, vector<96x32xbf16>
      %64 = arith.truncf %62 : vector<32x256xf32> to vector<32x256xbf16>
      %cst_38 = arith.constant dense<0.000000e+00> : vector<96x256xf32>
      %65 = tpu.matmul %63, %64, %cst_38 {dimension_numbers = #tpu.dot_dimension_numbers<[1], [0], [0], [1], [0, 0, 1, 1], [], []>} : vector<96x32xbf16>, vector<32x256xbf16>, vector<96x256xf32> -> vector<96x256xf32>
      %c0_39 = arith.constant 0 : index
      %c0_40 = arith.constant 0 : index
      %66 = vector.load %arg7[%c0_39, %c0_40] : memref<96x1xf32, #tpu.memory_space<vmem>>, vector<96x1xf32>
      %67 = vector.broadcast %66 : vector<96x1xf32> to vector<96x256xf32>
      %68 = arith.addf %65, %67 : vector<96x256xf32>
      %69 = vector.extract_strided_slice %68 {offsets = [0, 0], sizes = [32, 256], strides = [1, 1]} : vector<96x256xf32> to vector<32x256xf32>
      %70 = tpu.transpose %69, [1, 0] : vector<32x256xf32> -> vector<256x32xf32>
      %71 = arith.truncf %70 : vector<256x32xf32> to vector<256x32xbf16>
      %c0_41 = arith.constant 0 : index
      %c0_42 = arith.constant 0 : index
      %72 = vector.load %arg11[%c0_41, %c0_42] : memref<256x32xbf16, #tpu.memory_space<vmem>>, vector<256x32xbf16>
      tpu.vector_store %arg11[%c0_41, %c0_42], %71 {strides = array<i32>} : memref<256x32xbf16, #tpu.memory_space<vmem>>, vector<256x32xbf16>,
      %73 = vector.extract_strided_slice %68 {offsets = [32, 0], sizes = [64, 256], strides = [1, 1]} : vector<96x256xf32> to vector<64x256xf32>
      %74 = arith.truncf %73 : vector<64x256xf32> to vector<64x256xbf16>
      %c0_43 = arith.constant 0 : index
      %c0_44 = arith.constant 0 : index
      %75 = vector.load %arg12[%c0_43, %c0_44] : memref<64x256xbf16, #tpu.memory_space<vmem>>, vector<64x256xbf16>
      tpu.vector_store %arg12[%c0_43, %c0_44], %74 {strides = array<i32>} : memref<64x256xbf16, #tpu.memory_space<vmem>>, vector<64x256xbf16>,
    } else {
    }
    %c256_i32 = arith.constant 256 : i32
    %3 = arith.muli %arg1, %c256_i32 : i32
    %4 = tpu.assume_multiple %3, 256 : i32
    %5 = arith.index_cast %4 : i32 to index
    %c0 = arith.constant 0 : index
    %6 = vector.load %arg11[%5, %c0] : memref<256x32xbf16, #tpu.memory_space<vmem>>, vector<256x32xbf16>
    %c0_1 = arith.constant 0 : index
    %c0_2 = arith.constant 0 : index
    %7 = vector.load %arg12[%c0_1, %c0_2] : memref<64x256xbf16, #tpu.memory_space<vmem>>, vector<32x256xbf16>
    %c32 = arith.constant 32 : index
    %c0_3 = arith.constant 0 : index
    %8 = vector.load %arg12[%c32, %c0_3] : memref<64x256xbf16, #tpu.memory_space<vmem>>, vector<32x256xbf16>
    %cst = arith.constant dense<0.000000e+00> : vector<256x256xf32>
    %9 = tpu.matmul %6, %7, %cst {dimension_numbers = #tpu.dot_dimension_numbers<[1], [0], [0], [1], [0, 0, 1, 1], [], []>} : vector<256x32xbf16>, vector<32x256xbf16>, vector<256x256xf32> -> vector<256x256xf32>
    %cst_4 = arith.constant dense<0xFF800000> : vector<256xf32>
    %10 = vector.multi_reduction <maximumf>, %9, %cst_4 [1] : vector<256x256xf32> to vector<256xf32>
    %11 = vector.shape_cast %10 : vector<256xf32> to vector<256x1xf32>
    %12 = vector.broadcast %11 : vector<256x1xf32> to vector<256x256xf32>
    %13 = arith.subf %9, %12 : vector<256x256xf32>
    %14 = math.exp %13 : vector<256x256xf32>
    %cst_5 = arith.constant dense<0.000000e+00> : vector<256xf32>
    %15 = vector.multi_reduction <add>, %14, %cst_5 [1] : vector<256x256xf32> to vector<256xf32>
    %16 = vector.shape_cast %15 : vector<256xf32> to vector<256x1xf32>
    %cst_6 = arith.constant 1.000000e+00 : f32
    %17 = vector.broadcast %cst_6 : f32 to vector<256x1xf32>
    %18 = arith.divf %17, %16 : vector<256x1xf32>
    %19 = vector.broadcast %18 : vector<256x1xf32> to vector<256x256xf32>
    %20 = arith.mulf %14, %19 : vector<256x256xf32>
    %21 = arith.truncf %20 : vector<256x256xf32> to vector<256x256xbf16>
    %cst_7 = arith.constant dense<0.000000e+00> : vector<32x256xf32>
    %22 = tpu.matmul %8, %21, %cst_7 {dimension_numbers = #tpu.dot_dimension_numbers<[1], [1], [0], [0], [0, 0, 1, 0], [], []>} : vector<32x256xbf16>, vector<256x256xbf16>, vector<32x256xf32> -> vector<32x256xf32>
    %c0_8 = arith.constant 0 : index
    %c0_9 = arith.constant 0 : index
    %23 = vector.load %arg8[%c0_8, %c0_9] : memref<32x32xbf16, #tpu.memory_space<vmem>>, vector<32x32xbf16>
    %24 = arith.truncf %22 : vector<32x256xf32> to vector<32x256xbf16>
    %cst_10 = arith.constant dense<0.000000e+00> : vector<32x256xf32>
    %25 = tpu.matmul %23, %24, %cst_10 {dimension_numbers = #tpu.dot_dimension_numbers<[1], [0], [0], [1], [0, 0, 1, 1], [], []>} : vector<32x32xbf16>, vector<32x256xbf16>, vector<32x256xf32> -> vector<32x256xf32>
    %c0_11 = arith.constant 0 : index
    %c0_12 = arith.constant 0 : index
    %26 = vector.load %arg9[%c0_11, %c0_12] : memref<32x1xf32, #tpu.memory_space<vmem>>, vector<32x1xf32>
    %27 = vector.broadcast %26 : vector<32x1xf32> to vector<32x256xf32>
    %28 = arith.addf %25, %27 : vector<32x256xf32>
    %c0_13 = arith.constant 0 : index
    %c0_14 = arith.constant 0 : index
    %29 = arith.index_cast %4 : i32 to index
    %30 = vector.load %arg2[%c0_13, %c0_14, %29] : memref<1x32x256xf32, #tpu.memory_space<vmem>>, vector<1x32x256xf32>
    %31 = vector.shape_cast %30 : vector<1x32x256xf32> to vector<32x256xf32>
    %32 = arith.addf %31, %28 : vector<32x256xf32>
    %c0_15 = arith.constant 0 : index
    %c0_16 = arith.constant 0 : index
    %c0_17 = arith.constant 0 : index
    %33 = vector.load %arg10[%c0_15, %c0_16, %c0_17] : memref<1x32x256xf32, #tpu.memory_space<vmem>>, vector<1x32x256xf32>
    %34 = vector.shape_cast %33 : vector<1x32x256xf32> to vector<32x256xf32>
    %35 = vector.shape_cast %32 : vector<32x256xf32> to vector<1x32x256xf32>
    tpu.vector_store %arg10[%c0_15, %c0_16, %c0_17], %35 {strides = array<i32>} : memref<1x32x256xf32, #tpu.memory_space<vmem>>, vector<1x32x256xf32>,
    return
  }
  func.func @transform_0(%arg0: i32, %arg1: i32) -> (i32, i32, i32) {
    %c0_i32 = arith.constant 0 : i32
    %c0_i32_0 = arith.constant 0 : i32
    %c0_i32_1 = arith.constant 0 : i32
    return %arg0, %c0_i32, %c0_i32_0 : i32, i32, i32
  }
  func.func @transform_1(%arg0: i32, %arg1: i32) -> (i32, i32) {
    %c0_i32 = arith.constant 0 : i32
    %c0_i32_0 = arith.constant 0 : i32
    %c0_i32_1 = arith.constant 0 : i32
    return %c0_i32, %c0_i32_0 : i32, i32
  }
  func.func @transform_2(%arg0: i32, %arg1: i32) -> (i32, i32) {
    %c0_i32 = arith.constant 0 : i32
    %c0_i32_0 = arith.constant 0 : i32
    %c0_i32_1 = arith.constant 0 : i32
    return %c0_i32, %c0_i32_0 : i32, i32
  }
  func.func @transform_3(%arg0: i32, %arg1: i32) -> (i32, i32) {
    %c0_i32 = arith.constant 0 : i32
    %c0_i32_0 = arith.constant 0 : i32
    %c0_i32_1 = arith.constant 0 : i32
    return %c0_i32, %c0_i32_0 : i32, i32
  }
  func.func @transform_4(%arg0: i32, %arg1: i32) -> (i32, i32) {
    %c0_i32 = arith.constant 0 : i32
    %c0_i32_0 = arith.constant 0 : i32
    %c0_i32_1 = arith.constant 0 : i32
    return %c0_i32, %c0_i32_0 : i32, i32
  }
  func.func @transform_5(%arg0: i32, %arg1: i32) -> (i32, i32) {
    %c0_i32 = arith.constant 0 : i32
    %c0_i32_0 = arith.constant 0 : i32
    %c0_i32_1 = arith.constant 0 : i32
    return %c0_i32, %c0_i32_0 : i32, i32
  }
  func.func @transform_6(%arg0: i32, %arg1: i32) -> (i32, i32) {
    %c0_i32 = arith.constant 0 : i32
    %c0_i32_0 = arith.constant 0 : i32
    %c0_i32_1 = arith.constant 0 : i32
    return %c0_i32, %c0_i32_0 : i32, i32
  }
  func.func @transform_7(%arg0: i32, %arg1: i32) -> (i32, i32) {
    %c0_i32 = arith.constant 0 : i32
    %c0_i32_0 = arith.constant 0 : i32
    %c0_i32_1 = arith.constant 0 : i32
    return %c0_i32, %c0_i32_0 : i32, i32
  }
  func.func @transform_8(%arg0: i32, %arg1: i32) -> (i32, i32, i32) {
    %c0_i32 = arith.constant 0 : i32
    %c0_i32_0 = arith.constant 0 : i32
    return %arg0, %c0_i32, %arg1 : i32, i32, i32
  }
}

</mosaic_0001>

<llo_original>
// kernel: tpu_custom_call.1
$region0: #{tpu_custom_call.1}
  #allocation0 [shape = 'u32[]', space=smem, size = 0x4, offset = 0x4, fixed_abs, tag = 'smem constant byte address 0x4 - core index']
  #allocation1 [shape = 'u32[72,128]{1,0:T(1,128)}', space=vmem, size = 0x9000, scoped, tag = 'internal scratch']
  #allocation2 [shape = 'bf16[256,32]{1,0:T(8,128)(2,1)}', space=vmem, size = 0x10000, scoped, tag = 'scratch operand']
  #allocation3 [shape = 'bf16[64,256]{1,0:T(8,128)(2,1)}', space=vmem, size = 0x8000, scoped, tag = 'scratch operand']
  %s0 = inlined_call_operand.vmem [shape: f32[2,32,256], index: 0, kind: input, shape index: {}]
  %s1 = inlined_call_operand.vmem [shape: f32[32,32], index: 1, kind: input, shape index: {}]
  %s2 = inlined_call_operand.vmem [shape: f32[32,1], index: 2, kind: input, shape index: {}]
  %s3 = inlined_call_operand.vmem [shape: f32[32,1], index: 3, kind: input, shape index: {}]
  %s4 = inlined_call_operand.vmem [shape: bf16[96,32], index: 4, kind: input, shape index: {}]
  %s5 = inlined_call_operand.vmem [shape: f32[96,1], index: 5, kind: input, shape index: {}]
  %s6 = inlined_call_operand.vmem [shape: bf16[32,32], index: 6, kind: input, shape index: {}]
  %s7 = inlined_call_operand.vmem [shape: f32[32,1], index: 7, kind: input, shape index: {}]
  %s8 = inlined_call_operand.hbm [shape: f32[2,32,256], index: 8, kind: output, shape index: {}]
  %s9 = sld [smem:[#allocation0]]
  $region69: #{tpu_custom_call.1} parent=0
    _
  %s11 = ssub.s32 1, %s9
  %s12 = scalar_select 0, %s11, %s9
  $region1: #{tpu_custom_call.1} parent=0
    #allocation4 [shape = 'u8[65536]{0}', space=vmem, size = 0x10000, scoped, tag = 'output window, operand 0']
    #allocation5 [shape = 's32[2]{0}', space=sflag, size = 0x8, scoped, tag = 'scoped memory for tpu_custom_call.1']
    %13 = vsyncpa [#allocation5], 0
    %s14 = scalar_lea.sflag [#allocation5], 1
    %15 = vsyncpa %s14, 0
    loop: start=0, step=1, limit=4
    $region2: #{tpu_custom_call.1} parent=1 // loop_pre_header
      _
    $region3: #{tpu_custom_call.1} parent=1 // loop_header
      %s17 = sphi 0, %s21
      %p18 = scmp.ge.s32.totalorder %s17, 4
      %s24 = sphi 0, %s36
      %s25 = sphi 0, %s32
      %s26 = sphi 0, %s24
      %s27 = sphi 0, %s25
      %s28 = sphi 0, %s26
      %s29 = sphi 0, %s27
      %s39 = sphi 0, %s41
      %s42 = sphi 0, %s39
      %s43 = sphi 0, %s42
      %s59 = sphi 0, %s43
      %s63 = sphi 0, %s63
      %s65 = sphi 0, %s63
      %s66 = sphi 0, %s65
      %s80 = sphi 0, %s66
      %s84 = sphi 0, %s84
      %s86 = sphi 0, %s84
      %s87 = sphi 0, %s86
      %s101 = sphi 0, %s87
      %s105 = sphi 0, %s105
      %s107 = sphi 0, %s105
      %s108 = sphi 0, %s107
      %s122 = sphi 0, %s108
      %s126 = sphi 0, %s126
      %s128 = sphi 0, %s126
      %s129 = sphi 0, %s128
      %s143 = sphi 0, %s129
      %s147 = sphi 0, %s147
      %s149 = sphi 0, %s147
      %s150 = sphi 0, %s149
      %s164 = sphi 0, %s150
      %s168 = sphi 0, %s168
      %s170 = sphi 0, %s168
      %s171 = sphi 0, %s170
      %s185 = sphi 0, %s171
      %s189 = sphi 0, %s189
      %s191 = sphi 0, %s189
      %s192 = sphi 0, %s191
      %s206 = sphi 0, %s192
      %s214 = sphi 0, %s216
      %s217 = sphi 0, %s214
      %s218 = sphi 0, %s217
      %s234 = sphi 0, %s218
    $region4: #{tpu_custom_call.1} parent=1 // loop_header_branch
      %20 = sbr.rel (%p18) target = $region8
    $region5: #{tpu_custom_call.1} parent=1 // loop_body
      %s22 = ssub.s32 %s17, 1
      %s23 = ssub.s32 %s17, 2
      %s30 = sadd.s32 1, %s25
      %p31 = scmp.ge.s32.totalorder %s30, 1
      %s32 = scalar_select %p31, 0, %s30
      %s33 = sadd.s32 1, %s24
      %s34 = scalar_select %p31, %s33, %s24
      %p35 = scmp.ge.s32.totalorder %s34, 2
      %s36 = scalar_select %p35, 0, %s34
      %s37 = ssub.s32 %s24, %s36
      %p38 = scmp.eq.s32.totalorder %s37, 0
      %s40 = sadd.s32 %s39, 1
      %s41 = scalar_select %p38, %s39, %s40
      %p44 = pneg %p38
      %p45 = scmp.eq.s32.totalorder %s17, 1
      %p46 = por %p44, %p45
      %p47 = scmp.ne.s32.totalorder %s39, %s42
      %p48 = scmp.eq.s32.totalorder %s17, 0
      %p49 = por %p47, %p48
      %p50 = scmp.ne.s32.totalorder %s39, %s42
      %p51 = scmp.eq.s32.totalorder %s22, 1
      %p52 = por %p50, %p51
      %p53 = scmp.ne.s32.totalorder %s42, %s43
      %p54 = scmp.eq.s32.totalorder %s22, 0
      %p55 = por %p53, %p54
      %p56 = scmp.ne.s32.totalorder %s42, %s43
      %p57 = scmp.eq.s32.totalorder %s23, 1
      %p58 = por %p56, %p57
      %p60 = scmp.ne.s32.totalorder %s43, %s59
      %p61 = scmp.eq.s32.totalorder %s23, 0
      %p62 = por %p60, %p61
      %s64 = sadd.s32 %s63, 1
      %p67 = scmp.eq.s32.totalorder %s17, 1
      %p68 = scmp.ne.s32.totalorder %s63, %s65
      %p69 = scmp.eq.s32.totalorder %s17, 0
      %p70 = por %p68, %p69
      %p71 = scmp.ne.s32.totalorder %s63, %s65
      %p72 = scmp.eq.s32.totalorder %s22, 1
      %p73 = por %p71, %p72
      %p74 = scmp.ne.s32.totalorder %s65, %s66
      %p75 = scmp.eq.s32.totalorder %s22, 0
      %p76 = por %p74, %p75
      %p77 = scmp.ne.s32.totalorder %s65, %s66
      %p78 = scmp.eq.s32.totalorder %s23, 1
      %p79 = por %p77, %p78
      %p81 = scmp.ne.s32.totalorder %s66, %s80
      %p82 = scmp.eq.s32.totalorder %s23, 0
      %p83 = por %p81, %p82
      %s85 = sadd.s32 %s84, 1
      %p88 = scmp.eq.s32.totalorder %s17, 1
      %p89 = scmp.ne.s32.totalorder %s84, %s86
      %p90 = scmp.eq.s32.totalorder %s17, 0
      %p91 = por %p89, %p90
      %p92 = scmp.ne.s32.totalorder %s84, %s86
      %p93 = scmp.eq.s32.totalorder %s22, 1
      %p94 = por %p92, %p93
      %p95 = scmp.ne.s32.totalorder %s86, %s87
      %p96 = scmp.eq.s32.totalorder %s22, 0
      %p97 = por %p95, %p96
      %p98 = scmp.ne.s32.totalorder %s86, %s87
      %p99 = scmp.eq.s32.totalorder %s23, 1
      %p100 = por %p98, %p99
      %p102 = scmp.ne.s32.totalorder %s87, %s101
      %p103 = scmp.eq.s32.totalorder %s23, 0
      %p104 = por %p102, %p103
      %s106 = sadd.s32 %s105, 1
      %p109 = scmp.eq.s32.totalorder %s17, 1
      %p110 = scmp.ne.s32.totalorder %s105, %s107
      %p111 = scmp.eq.s32.totalorder %s17, 0
      %p112 = por %p110, %p111
      %p113 = scmp.ne.s32.totalorder %s105, %s107
      %p114 = scmp.eq.s32.totalorder %s22, 1
      %p115 = por %p113, %p114
      %p116 = scmp.ne.s32.totalorder %s107, %s108
      %p117 = scmp.eq.s32.totalorder %s22, 0
      %p118 = por %p116, %p117
      %p119 = scmp.ne.s32.totalorder %s107, %s108
      %p120 = scmp.eq.s32.totalorder %s23, 1
      %p121 = por %p119, %p120
      %p123 = scmp.ne.s32.totalorder %s108, %s122
      %p124 = scmp.eq.s32.totalorder %s23, 0
      %p125 = por %p123, %p124
      %s127 = sadd.s32 %s126, 1
      %p130 = scmp.eq.s32.totalorder %s17, 1
      %p131 = scmp.ne.s32.totalorder %s126, %s128
      %p132 = scmp.eq.s32.totalorder %s17, 0
      %p133 = por %p131, %p132
      %p134 = scmp.ne.s32.totalorder %s126, %s128
      %p135 = scmp.eq.s32.totalorder %s22, 1
      %p136 = por %p134, %p135
      %p137 = scmp.ne.s32.totalorder %s128, %s129
      %p138 = scmp.eq.s32.totalorder %s22, 0
      %p139 = por %p137, %p138
      %p140 = scmp.ne.s32.totalorder %s128, %s129
      %p141 = scmp.eq.s32.totalorder %s23, 1
      %p142 = por %p140, %p141
      %p144 = scmp.ne.s32.totalorder %s129, %s143
      %p145 = scmp.eq.s32.totalorder %s23, 0
      %p146 = por %p144, %p145
      %s148 = sadd.s32 %s147, 1
      %p151 = scmp.eq.s32.totalorder %s17, 1
      %p152 = scmp.ne.s32.totalorder %s147, %s149
      %p153 = scmp.eq.s32.totalorder %s17, 0
      %p154 = por %p152, %p153
      %p155 = scmp.ne.s32.totalorder %s147, %s149
      %p156 = scmp.eq.s32.totalorder %s22, 1
      %p157 = por %p155, %p156
      %p158 = scmp.ne.s32.totalorder %s149, %s150
      %p159 = scmp.eq.s32.totalorder %s22, 0
      %p160 = por %p158, %p159
      %p161 = scmp.ne.s32.totalorder %s149, %s150
      %p162 = scmp.eq.s32.totalorder %s23, 1
      %p163 = por %p161, %p162
      %p165 = scmp.ne.s32.totalorder %s150, %s164
      %p166 = scmp.eq.s32.totalorder %s23, 0
      %p167 = por %p165, %p166
      %s169 = sadd.s32 %s168, 1
      %p172 = scmp.eq.s32.totalorder %s17, 1
      %p173 = scmp.ne.s32.totalorder %s168, %s170
      %p174 = scmp.eq.s32.totalorder %s17, 0
      %p175 = por %p173, %p174
      %p176 = scmp.ne.s32.totalorder %s168, %s170
      %p177 = scmp.eq.s32.totalorder %s22, 1
      %p178 = por %p176, %p177
      %p179 = scmp.ne.s32.totalorder %s170, %s171
      %p180 = scmp.eq.s32.totalorder %s22, 0
      %p181 = por %p179, %p180
      %p182 = scmp.ne.s32.totalorder %s170, %s171
      %p183 = scmp.eq.s32.totalorder %s23, 1
      %p184 = por %p182, %p183
      %p186 = scmp.ne.s32.totalorder %s171, %s185
      %p187 = scmp.eq.s32.totalorder %s23, 0
      %p188 = por %p186, %p187
      %s190 = sadd.s32 %s189, 1
      %p193 = scmp.eq.s32.totalorder %s17, 1
      %p194 = scmp.ne.s32.totalorder %s189, %s191
      %p195 = scmp.eq.s32.totalorder %s17, 0
      %p196 = por %p194, %p195
      %p197 = scmp.ne.s32.totalorder %s189, %s191
      %p198 = scmp.eq.s32.totalorder %s22, 1
      %p199 = por %p197, %p198
      %p200 = scmp.ne.s32.totalorder %s191, %s192
      %p201 = scmp.eq.s32.totalorder %s22, 0
      %p202 = por %p200, %p201
      %p203 = scmp.ne.s32.totalorder %s191, %s192
      %p204 = scmp.eq.s32.totalorder %s23, 1
      %p205 = por %p203, %p204
      %p207 = scmp.ne.s32.totalorder %s192, %s206
      %p208 = scmp.eq.s32.totalorder %s23, 0
      %p209 = por %p207, %p208
      %s210 = ssub.s32 %s24, %s36
      %s211 = ssub.s32 %s25, %s32
      %s212 = sor.u32 %s210, %s211
      %p213 = scmp.eq.s32.totalorder %s212, 0
      %s215 = sadd.s32 %s214, 1
      %s216 = scalar_select %p213, %s214, %s215
      %p219 = pneg %p213
      %p220 = scmp.eq.s32.totalorder %s17, 1
      %p221 = por %p219, %p220
      %p222 = scmp.ne.s32.totalorder %s214, %s217
      %p223 = scmp.eq.s32.totalorder %s17, 0
      %p224 = por %p222, %p223
      %p225 = scmp.ne.s32.totalorder %s214, %s217
      %p226 = scmp.eq.s32.totalorder %s22, 1
      %p227 = por %p225, %p226
      %p228 = scmp.ne.s32.totalorder %s217, %s218
      %p229 = scmp.eq.s32.totalorder %s22, 0
      %p230 = por %p228, %p229
      %p231 = scmp.ne.s32.totalorder %s217, %s218
      %p232 = scmp.eq.s32.totalorder %s23, 1
      %p233 = por %p231, %p232
      %p235 = scmp.ne.s32.totalorder %s218, %s234
      %p236 = scmp.eq.s32.totalorder %s23, 0
      %p237 = por %p235, %p236
      %p238 = scmp.le.s32.totalorder 1, %s17
      %p239 = scmp.lt.s32.totalorder %s17, 3
      %p240 = pnand %p238, %p239
      %p241 = pneg %p240
      // Predicated region
      $region9: #{tpu_custom_call.1} parent=5 // pred_check
        _
      $region10: #{tpu_custom_call.1} parent=5 // pred_check_branch
        %243 = sbr.rel (%p240) target = $region12
      $region11: #{tpu_custom_call.1} parent=5 // pred_region
        %s244 = ssub.s32 %s17, 1
        // Predicated region
        $region13: #{tpu_custom_call.1} parent=11 // pred_check
          %p245 = pneg %p76
        $region14: #{tpu_custom_call.1} parent=11 // pred_check_branch
          %247 = sbr.rel (%p245) target = $region16
        $region15: #{tpu_custom_call.1} parent=11 // pred_region
          _
        $region16: #{tpu_custom_call.1} parent=11 // pred_fallthru
          _
        // Predicated region
        $region17: #{tpu_custom_call.1} parent=11 // pred_check
          %p248 = pneg %p97
        $region18: #{tpu_custom_call.1} parent=11 // pred_check_branch
          %250 = sbr.rel (%p248) target = $region20
        $region19: #{tpu_custom_call.1} parent=11 // pred_region
          _
        $region20: #{tpu_custom_call.1} parent=11 // pred_fallthru
          _
        // Predicated region
        $region21: #{tpu_custom_call.1} parent=11 // pred_check
          %p251 = pneg %p118
        $region22: #{tpu_custom_call.1} parent=11 // pred_check_branch
          %253 = sbr.rel (%p251) target = $region24
        $region23: #{tpu_custom_call.1} parent=11 // pred_region
          _
        $region24: #{tpu_custom_call.1} parent=11 // pred_fallthru
          _
        // Predicated region
        $region25: #{tpu_custom_call.1} parent=11 // pred_check
          %p254 = pneg %p139
        $region26: #{tpu_custom_call.1} parent=11 // pred_check_branch
          %256 = sbr.rel (%p254) target = $region28
        $region27: #{tpu_custom_call.1} parent=11 // pred_region
          _
        $region28: #{tpu_custom_call.1} parent=11 // pred_fallthru
          _
        // Predicated region
        $region29: #{tpu_custom_call.1} parent=11 // pred_check
          %p257 = pneg %p160
        $region30: #{tpu_custom_call.1} parent=11 // pred_check_branch
          %259 = sbr.rel (%p257) target = $region32
        $region31: #{tpu_custom_call.1} parent=11 // pred_region
          _
        $region32: #{tpu_custom_call.1} parent=11 // pred_fallthru
          _
        // Predicated region
        $region33: #{tpu_custom_call.1} parent=11 // pred_check
          %p260 = pneg %p181
        $region34: #{tpu_custom_call.1} parent=11 // pred_check_branch
          %262 = sbr.rel (%p260) target = $region36
        $region35: #{tpu_custom_call.1} parent=11 // pred_region
          _
        $region36: #{tpu_custom_call.1} parent=11 // pred_fallthru
          _
        // Predicated region
        $region37: #{tpu_custom_call.1} parent=11 // pred_check
          %p263 = pneg %p202
        $region38: #{tpu_custom_call.1} parent=11 // pred_check_branch
          %265 = sbr.rel (%p263) target = $region40
        $region39: #{tpu_custom_call.1} parent=11 // pred_region
          _
        $region40: #{tpu_custom_call.1} parent=11 // pred_fallthru
          _
      $region12: #{tpu_custom_call.1} parent=5 // pred_fallthru
        _
      %p266 = scmp.lt.s32.totalorder %s17, 2
      // Predicated region
      $region41: #{tpu_custom_call.1} parent=5 // pred_check
        %p267 = pneg %p266
      $region42: #{tpu_custom_call.1} parent=5 // pred_check_branch
        %269 = sbr.rel (%p267) target = $region44
      $region43: #{tpu_custom_call.1} parent=5 // pred_region
        // Predicated region
        $region45: #{tpu_custom_call.1} parent=43 // pred_check
          %p270 = pneg %p49
        $region46: #{tpu_custom_call.1} parent=43 // pred_check_branch
          %272 = sbr.rel (%p270) target = $region48
        $region47: #{tpu_custom_call.1} parent=43 // pred_region
          %p273 = scmp.lt.s32.totalorder %s24, 1
          %s274 = scalar_select %p273, %s24, 1
          %s275 = smul.addr %s274, 8
          %s276 = smul.addr %s275, 8
          %s277 = scalar_lea.vmem %s0, %s276
        $region48: #{tpu_custom_call.1} parent=43 // pred_fallthru
          _
      $region44: #{tpu_custom_call.1} parent=5 // pred_fallthru
        _
      %p278 = scmp.le.s32.totalorder 1, %s17
      %p279 = scmp.lt.s32.totalorder %s17, 3
      %p280 = pnand %p278, %p279
      %p281 = pneg %p280
      // Predicated region
      $region49: #{tpu_custom_call.1} parent=5 // pred_check
        _
      $region50: #{tpu_custom_call.1} parent=5 // pred_check_branch
        %283 = sbr.rel (%p280) target = $region52
      $region51: #{tpu_custom_call.1} parent=5 // pred_region
        %s284 = ssub.s32 %s17, 1
        %p285 = scmp.lt.s32.totalorder %s26, 1
        %s286 = scalar_select %p285, %s26, 1
        %s287 = smul.addr %s286, 8
        %s288 = smul.addr %s287, 8
        %s289 = scalar_lea.vmem %s0, %s288
        %p290 = pneg %p55
        %p291 = pneg %p52
        %p292 = pneg %p76
        %p293 = pneg %p73
        %p294 = pneg %p97
        %p295 = pneg %p94
        %p296 = pneg %p118
        %p297 = pneg %p115
        %p298 = pneg %p139
        %p299 = pneg %p136
        %p300 = pneg %p160
        %p301 = pneg %p157
        %p302 = pneg %p181
        %p303 = pneg %p178
        %p304 = pneg %p202
        %p305 = pneg %p199
        %p306 = pneg %p230
        %p307 = pneg %p227
        %s308 = sand.u32 %s217, 1
        %s309 = scalar_lea.sflag [#allocation5], %s308
        %s310 = sand.u32 %s217, 1
        %s311 = smul.addr %s310, 64
        %s312 = scalar_lea.vmem [#allocation4], %s311
        %p313 = scmp.lt.s32.totalorder %s26, 1
        %s314 = scalar_select %p313, %s26, 1
        %s315 = smul.addr %s314, 8
        %s316 = smul.addr %s315, 8
        %s317 = scalar_lea.vmem %s0, %s316
        %s318 = smul.u32 2, %s27
        %p320 = scmp.eq.s32.totalorder %s27, 0
        // Predicated region
        $region53: #{tpu_custom_call.1} parent=51 // pred_check
          %p321 = pneg %p320
        $region54: #{tpu_custom_call.1} parent=51 // pred_check_branch
          %323 = sbr.rel (%p321) target = $region56
        $region55: #{tpu_custom_call.1} parent=51 // pred_region
          %v324 = vld [vmem:[%s317] sm:$0xff]
          %v325 = vld [vmem:[%s317 + $0x8] sm:$0xff]
          %v326 = vld [vmem:[%s317 + $0x10] sm:$0xff]
          %v327 = vld [vmem:[%s317 + $0x18] sm:$0xff]
          %v328 = vld [vmem:[%s317 + $0x20] sm:$0xff]
          %v329 = vld [vmem:[%s317 + $0x28] sm:$0xff]
          %v330 = vld [vmem:[%s317 + $0x30] sm:$0xff]
          %v331 = vld [vmem:[%s317 + $0x38] sm:$0xff]
          %v332 = vadd.f32 %v324, %v325
          %333 = vadd.xlane.f32.xlu0 %v332
          %v334 = vpop.xlane.xlu0 %333
          %v335 = vadd.f32 %v326, %v327
          %336 = vadd.xlane.f32.xlu0 %v335
          %v337 = vpop.xlane.xlu0 %336
          %v338 = vadd.f32 %v328, %v329
          %339 = vadd.xlane.f32.xlu0 %v338
          %v340 = vpop.xlane.xlu0 %339
          %v341 = vadd.f32 %v330, %v331
          %342 = vadd.xlane.f32.xlu0 %v341
          %v343 = vpop.xlane.xlu0 %342
          %v344 = vld [vmem:[%s1] sm:$0xff]
          %v345 = vld [vmem:[%s1 + $0x8] sm:$0xff]
          %v346 = vld [vmem:[%s1 + $0x10] sm:$0xff]
          %v347 = vld [vmem:[%s1 + $0x18] sm:$0xff]
          %vm348 = vcmask 261120
          %v350 = vsel %vm348, %v344, 0
          %v353 = vsel %vm348, %v345, 0
          %v356 = vsel %vm348, %v346, 0
          %v359 = vsel %vm348, %v347, 0
          %361 = vmatpush.msra.mxu0 0.0
          %362 = vmatpush.msra.mxu0 0.0
          %363 = vmatpush.msra.mxu0 0.0
          %364 = vmatpush.msra.mxu0 0.0
          %365 = vmatpush.msra.mxu0 0.0
          %366 = vmatpush.msra.mxu0 0.0
          %367 = vmatpush.msra.mxu0 0.0
          %368 = vmatpush.msra.mxu0 0.0
          %369 = vmatpush.msra.mxu0 0.0
          %370 = vmatpush.msra.mxu0 0.0
          %371 = vmatpush.msra.mxu0 0.0
          %372 = vmatpush.msra.mxu0 0.0
          %373 = vmatpush.msra.mxu0 %v343
          %374 = vmatpush.msra.mxu0 %v340
          %375 = vmatpush.msra.mxu0 %v337
          %376 = vmatpush.msra.mxu0 %v334
          %377 = vmatmul.f32.gmra.mxu0 %v350
          %v378 = vpop.f32.mrf.mxu0
          %v379 = vadd.f32 0.0, %v378
          %380 = vmatmul.f32.gmra.mxu0 %v353
          %v381 = vpop.f32.mrf.mxu0
          %v382 = vadd.f32 0.0, %v381
          %383 = vmatmul.f32.gmra.mxu0 %v356
          %v384 = vpop.f32.mrf.mxu0
          %v385 = vadd.f32 0.0, %v384
          %386 = vmatmul.f32.gmra.mxu0 %v359
          %v387 = vpop.f32.mrf.mxu0
          %v388 = vadd.f32 0.0, %v387
          %389 = vdwg.mxu0
          %v390 = vrcp.pop 1024.0
          %v391 = vmul.f32 1024.0, %v390
          %v392 = vsub.f32 1.0, %v391
          %v393 = vmul.f32 %v390, %v392
          %v394 = vadd.f32 %v390, %v393
          %vm395 = vweird.f32 %v390
          %v396 = vsel %vm395, %v390, %v394
          %v397 = vmul.f32 %v379, %v396
          %v398 = vmul.f32 %v382, %v396
          %v399 = vmul.f32 %v385, %v396
          %v400 = vmul.f32 %v388, %v396
          %402 = vset.pattern.permute.xlu0 0
          %403 = vperm.xlu0 %402, %v397
          %v404 = vpop.permute.xlu0 %403
          %407 = vset.pattern.permute.xlu0 0
          %408 = vperm.xlu0 %407, %v398
          %v409 = vpop.permute.xlu0 %408
          %412 = vset.pattern.permute.xlu0 0
          %413 = vperm.xlu0 %412, %v399
          %v414 = vpop.permute.xlu0 %413
          %417 = vset.pattern.permute.xlu0 0
          %418 = vperm.xlu0 %417, %v400
          %v419 = vpop.permute.xlu0 %418
          %v421 = vsub.f32 %v324, %v404
          %v422 = vsub.f32 %v325, %v404
          %v423 = vsub.f32 %v326, %v409
          %v424 = vsub.f32 %v327, %v409
          %v425 = vsub.f32 %v328, %v414
          %v426 = vsub.f32 %v329, %v414
          %v427 = vsub.f32 %v330, %v419
          %v428 = vsub.f32 %v331, %v419
          %v429 = vmul.f32 %v421, %v421
          %v430 = vmul.f32 %v422, %v422
          %v431 = vmul.f32 %v423, %v423
          %v432 = vmul.f32 %v424, %v424
          %v433 = vmul.f32 %v425, %v425
          %v434 = vmul.f32 %v426, %v426
          %v435 = vmul.f32 %v427, %v427
          %v436 = vmul.f32 %v428, %v428
          %v437 = vadd.f32 %v429, %v430
          %438 = vadd.xlane.f32.xlu0 %v437
          %v439 = vpop.xlane.xlu0 %438
          %v440 = vadd.f32 %v431, %v432
          %441 = vadd.xlane.f32.xlu0 %v440
          %v442 = vpop.xlane.xlu0 %441
          %v443 = vadd.f32 %v433, %v434
          %444 = vadd.xlane.f32.xlu0 %v443
          %v445 = vpop.xlane.xlu0 %444
          %v446 = vadd.f32 %v435, %v436
          %447 = vadd.xlane.f32.xlu0 %v446
          %v448 = vpop.xlane.xlu0 %447
          %449 = vmatpush.msra.mxu0 0.0
          %450 = vmatpush.msra.mxu0 0.0
          %451 = vmatpush.msra.mxu0 0.0
          %452 = vmatpush.msra.mxu0 0.0
          %453 = vmatpush.msra.mxu0 0.0
          %454 = vmatpush.msra.mxu0 0.0
          %455 = vmatpush.msra.mxu0 0.0
          %456 = vmatpush.msra.mxu0 0.0
          %457 = vmatpush.msra.mxu0 0.0
          %458 = vmatpush.msra.mxu0 0.0
          %459 = vmatpush.msra.mxu0 0.0
          %460 = vmatpush.msra.mxu0 0.0
          %461 = vmatpush.msra.mxu0 %v448
          %462 = vmatpush.msra.mxu0 %v445
          %463 = vmatpush.msra.mxu0 %v442
          %464 = vmatpush.msra.mxu0 %v439
          %465 = vmatmul.f32.gmra.mxu0 %v350
          %v466 = vpop.f32.mrf.mxu0
          %v467 = vadd.f32 0.0, %v466
          %468 = vmatmul.f32.gmra.mxu0 %v353
          %v469 = vpop.f32.mrf.mxu0
          %v470 = vadd.f32 0.0, %v469
          %471 = vmatmul.f32.gmra.mxu0 %v356
          %v472 = vpop.f32.mrf.mxu0
          %v473 = vadd.f32 0.0, %v472
          %474 = vmatmul.f32.gmra.mxu0 %v359
          %v475 = vpop.f32.mrf.mxu0
          %v476 = vadd.f32 0.0, %v475
          %477 = vdwg.mxu0
          %v478 = vmul.f32 %v467, %v396
          %v479 = vmul.f32 %v470, %v396
          %v480 = vmul.f32 %v473, %v396
          %v481 = vmul.f32 %v476, %v396
          %v482 = vadd.f32 %v478, 1e-06
          %v483 = vadd.f32 %v479, 1e-06
          %v484 = vadd.f32 %v480, 1e-06
          %v485 = vadd.f32 %v481, 1e-06
          %v486 = vrsqrt.pop %v482
          %v487 = vmul.f32 %v486, %v482
          %v488 = vmul.f32 %v487, %v486
          %v489 = vmul.f32 0.5, %v488
          %v490 = vsub.f32 1.5, %v489
          %v491 = vmul.f32 %v486, %v490
          %vm492 = vweird.f32 %v482
          %vm493 = vweird.f32 %v486
          %vm494 = vmor %vm492, %vm493
          %v495 = vsel %vm494, %v486, %v491
          %v496 = vrsqrt.pop %v483
          %v497 = vmul.f32 %v496, %v483
          %v498 = vmul.f32 %v497, %v496
          %v499 = vmul.f32 0.5, %v498
          %v500 = vsub.f32 1.5, %v499
          %v501 = vmul.f32 %v496, %v500
          %vm502 = vweird.f32 %v483
          %vm503 = vweird.f32 %v496
          %vm504 = vmor %vm502, %vm503
          %v505 = vsel %vm504, %v496, %v501
          %v506 = vrsqrt.pop %v484
          %v507 = vmul.f32 %v506, %v484
          %v508 = vmul.f32 %v507, %v506
          %v509 = vmul.f32 0.5, %v508
          %v510 = vsub.f32 1.5, %v509
          %v511 = vmul.f32 %v506, %v510
          %vm512 = vweird.f32 %v484
          %vm513 = vweird.f32 %v506
          %vm514 = vmor %vm512, %vm513
          %v515 = vsel %vm514, %v506, %v511
          %v516 = vrsqrt.pop %v485
          %v517 = vmul.f32 %v516, %v485
          %v518 = vmul.f32 %v517, %v516
          %v519 = vmul.f32 0.5, %v518
          %v520 = vsub.f32 1.5, %v519
          %v521 = vmul.f32 %v516, %v520
          %vm522 = vweird.f32 %v485
          %vm523 = vweird.f32 %v516
          %vm524 = vmor %vm522, %vm523
          %v525 = vsel %vm524, %v516, %v521
          %v526 = vld [vmem:[%s2] sm:$0xff]
          %v527 = vld [vmem:[%s2 + $0x8] sm:$0xff]
          %v528 = vld [vmem:[%s2 + $0x10] sm:$0xff]
          %v529 = vld [vmem:[%s2 + $0x18] sm:$0xff]
          %v530 = vmul.f32 %v495, %v526
          %v531 = vmul.f32 %v505, %v527
          %v532 = vmul.f32 %v515, %v528
          %v533 = vmul.f32 %v525, %v529
          %535 = vset.pattern.permute.xlu0 0
          %536 = vperm.xlu0 %535, %v530
          %v537 = vpop.permute.xlu0 %536
          %540 = vset.pattern.permute.xlu0 0
          %541 = vperm.xlu0 %540, %v531
          %v542 = vpop.permute.xlu0 %541
          %545 = vset.pattern.permute.xlu0 0
          %546 = vperm.xlu0 %545, %v532
          %v547 = vpop.permute.xlu0 %546
          %550 = vset.pattern.permute.xlu0 0
          %551 = vperm.xlu0 %550, %v533
          %v552 = vpop.permute.xlu0 %551
          %v554 = vmul.f32 %v421, %v537
          %v555 = vmul.f32 %v422, %v537
          %v556 = vmul.f32 %v423, %v542
          %v557 = vmul.f32 %v424, %v542
          %v558 = vmul.f32 %v425, %v547
          %v559 = vmul.f32 %v426, %v547
          %v560 = vmul.f32 %v427, %v552
          %v561 = vmul.f32 %v428, %v552
          %v562 = vld [vmem:[%s3] sm:$0xff]
          %v563 = vld [vmem:[%s3 + $0x8] sm:$0xff]
          %v564 = vld [vmem:[%s3 + $0x10] sm:$0xff]
          %v565 = vld [vmem:[%s3 + $0x18] sm:$0xff]
          %567 = vset.pattern.permute.xlu0 0
          %568 = vperm.xlu0 %567, %v562
          %v569 = vpop.permute.xlu0 %568
          %572 = vset.pattern.permute.xlu0 0
          %573 = vperm.xlu0 %572, %v563
          %v574 = vpop.permute.xlu0 %573
          %577 = vset.pattern.permute.xlu0 0
          %578 = vperm.xlu0 %577, %v564
          %v579 = vpop.permute.xlu0 %578
          %582 = vset.pattern.permute.xlu0 0
          %583 = vperm.xlu0 %582, %v565
          %v584 = vpop.permute.xlu0 %583
          %v586 = vadd.f32 %v554, %v569
          %v587 = vadd.f32 %v555, %v569
          %v588 = vadd.f32 %v556, %v574
          %v589 = vadd.f32 %v557, %v574
          %v590 = vadd.f32 %v558, %v579
          %v591 = vadd.f32 %v559, %v579
          %v592 = vadd.f32 %v560, %v584
          %v593 = vadd.f32 %v561, %v584
          %v594 = vld [vmem:[%s4] sm:$0xf]
          %v595 = vld [vmem:[%s4 + $0x4] sm:$0xf]
          %v596 = vld [vmem:[%s4 + $0x8] sm:$0xf]
          %v597 = vld [vmem:[%s4 + $0xc] sm:$0xf]
          %v598 = vld [vmem:[%s4 + $0x10] sm:$0xf]
          %v599 = vld [vmem:[%s4 + $0x14] sm:$0xf]
          %v600 = vld [vmem:[%s4 + $0x18] sm:$0xf]
          %v601 = vld [vmem:[%s4 + $0x1c] sm:$0xf]
          %v602 = vld [vmem:[%s4 + $0x20] sm:$0xf]
          %v603 = vld [vmem:[%s4 + $0x24] sm:$0xf]
          %v604 = vld [vmem:[%s4 + $0x28] sm:$0xf]
          %v605 = vld [vmem:[%s4 + $0x2c] sm:$0xf]
          %v606 = vpack.c.bf16 %v588, %v586
          %v607 = vpack.c.bf16 %v589, %v587
          %v608 = vpack.c.bf16 %v592, %v590
          %v609 = vpack.c.bf16 %v593, %v591
          %v610 = vld [vmem:[%s5] sm:$0xff]
          %v611 = vld [vmem:[%s5 + $0x8] sm:$0xff]
          %v612 = vld [vmem:[%s5 + $0x10] sm:$0xff]
          %v613 = vld [vmem:[%s5 + $0x18] sm:$0xff]
          %v614 = vld [vmem:[%s5 + $0x20] sm:$0xff]
          %v615 = vld [vmem:[%s5 + $0x28] sm:$0xff]
          %v616 = vld [vmem:[%s5 + $0x30] sm:$0xff]
          %v617 = vld [vmem:[%s5 + $0x38] sm:$0xff]
          %v618 = vld [vmem:[%s5 + $0x40] sm:$0xff]
          %v619 = vld [vmem:[%s5 + $0x48] sm:$0xff]
          %v620 = vld [vmem:[%s5 + $0x50] sm:$0xff]
          %v621 = vld [vmem:[%s5 + $0x58] sm:$0xff]
          %623 = vset.pattern.permute.xlu0 0
          %624 = vperm.xlu0 %623, %v610
          %v625 = vpop.permute.xlu0 %624
          %628 = vset.pattern.permute.xlu0 0
          %629 = vperm.xlu0 %628, %v611
          %v630 = vpop.permute.xlu0 %629
          %633 = vset.pattern.permute.xlu0 0
          %634 = vperm.xlu0 %633, %v612
          %v635 = vpop.permute.xlu0 %634
          %638 = vset.pattern.permute.xlu0 0
          %639 = vperm.xlu0 %638, %v613
          %v640 = vpop.permute.xlu0 %639
          %643 = vset.pattern.permute.xlu0 0
          %644 = vperm.xlu0 %643, %v614
          %v645 = vpop.permute.xlu0 %644
          %648 = vset.pattern.permute.xlu0 0
          %649 = vperm.xlu0 %648, %v615
          %v650 = vpop.permute.xlu0 %649
          %653 = vset.pattern.permute.xlu0 0
          %654 = vperm.xlu0 %653, %v616
          %v655 = vpop.permute.xlu0 %654
          %658 = vset.pattern.permute.xlu0 0
          %659 = vperm.xlu0 %658, %v617
          %v660 = vpop.permute.xlu0 %659
          %663 = vset.pattern.permute.xlu0 0
          %664 = vperm.xlu0 %663, %v618
          %v665 = vpop.permute.xlu0 %664
          %668 = vset.pattern.permute.xlu0 0
          %669 = vperm.xlu0 %668, %v619
          %v670 = vpop.permute.xlu0 %669
          %673 = vset.pattern.permute.xlu0 0
          %674 = vperm.xlu0 %673, %v620
          %v675 = vpop.permute.xlu0 %674
          %678 = vset.pattern.permute.xlu0 0
          %679 = vperm.xlu0 %678, %v621
          %v680 = vpop.permute.xlu0 %679
          %v694 = vunpack.c.l.b16 %v594
          %v695 = vunpack.c.l.b16 %v595
          %v696 = vunpack.c.l.b16 %v596
          %v697 = vunpack.c.l.b16 %v597
          %v698 = vunpack.c.l.b16 %v598
          %v699 = vunpack.c.l.b16 %v599
          %v700 = vunpack.c.l.b16 %v600
          %v701 = vunpack.c.l.b16 %v601
          %v702 = vunpack.c.l.b16 %v602
          %v703 = vunpack.c.l.b16 %v603
          %v704 = vunpack.c.l.b16 %v604
          %v705 = vunpack.c.l.b16 %v605
          %v706 = vpack.c.b16 %v695, %v694
          %v707 = vpack.c.b16 %v697, %v696
          %v708 = vpack.c.b16 %v699, %v698
          %v709 = vpack.c.b16 %v701, %v700
          %v710 = vpack.c.b16 %v703, %v702
          %v711 = vpack.c.b16 %v705, %v704
          %v713 = vsel %vm348, %v706, 0
          %v716 = vsel %vm348, %v707, 0
          %v719 = vsel %vm348, %v708, 0
          %v722 = vsel %vm348, %v709, 0
          %v725 = vsel %vm348, %v710, 0
          %v728 = vsel %vm348, %v711, 0
          %730 = vmatpush.bf16.msra.mxu0 0
          %731 = vmatpush.bf16.msra.mxu0 0
          %732 = vmatpush.bf16.msra.mxu0 0
          %733 = vmatpush.bf16.msra.mxu0 0
          %734 = vmatpush.bf16.msra.mxu0 0
          %735 = vmatpush.bf16.msra.mxu0 0
          %736 = vmatpush.bf16.msra.mxu0 %v608
          %737 = vmatpush.bf16.msra.mxu0 %v606
          %738 = vmatmul.bf16.gmra.mxu0 %v713
          %v739 = vpop.f32.mrf.mxu0
          %v740 = vadd.f32 %v625, %v739
          %v741 = vpop.f32.mrf.mxu0
          %v742 = vadd.f32 %v630, %v741
          %743 = vmatmul.bf16.gmra.mxu0 %v716
          %v744 = vpop.f32.mrf.mxu0
          %v745 = vadd.f32 %v635, %v744
          %v746 = vpop.f32.mrf.mxu0
          %v747 = vadd.f32 %v640, %v746
          %748 = vmatmul.bf16.gmra.mxu0 %v719
          %v749 = vpop.f32.mrf.mxu0
          %v750 = vadd.f32 %v645, %v749
          %v751 = vpop.f32.mrf.mxu0
          %v752 = vadd.f32 %v650, %v751
          %753 = vmatmul.bf16.gmra.mxu0 %v722
          %v754 = vpop.f32.mrf.mxu0
          %v755 = vadd.f32 %v655, %v754
          %v756 = vpop.f32.mrf.mxu0
          %v757 = vadd.f32 %v660, %v756
          %758 = vmatmul.bf16.gmra.mxu0 %v725
          %v759 = vpop.f32.mrf.mxu0
          %v760 = vadd.f32 %v665, %v759
          %v761 = vpop.f32.mrf.mxu0
          %v762 = vadd.f32 %v670, %v761
          %763 = vmatmul.bf16.gmra.mxu0 %v728
          %v764 = vpop.f32.mrf.mxu0
          %v765 = vadd.f32 %v675, %v764
          %v766 = vpop.f32.mrf.mxu0
          %v767 = vadd.f32 %v680, %v766
          %768 = vdwg.mxu0
          %769 = vmatpush.bf16.msra.mxu0 0
          %770 = vmatpush.bf16.msra.mxu0 0
          %771 = vmatpush.bf16.msra.mxu0 0
          %772 = vmatpush.bf16.msra.mxu0 0
          %773 = vmatpush.bf16.msra.mxu0 0
          %774 = vmatpush.bf16.msra.mxu0 0
          %775 = vmatpush.bf16.msra.mxu0 %v609
          %776 = vmatpush.bf16.msra.mxu0 %v607
          %777 = vmatmul.bf16.gmra.mxu0 %v713
          %v778 = vpop.f32.mrf.mxu0
          %v779 = vadd.f32 %v625, %v778
          %v780 = vpop.f32.mrf.mxu0
          %v781 = vadd.f32 %v630, %v780
          %782 = vmatmul.bf16.gmra.mxu0 %v716
          %v783 = vpop.f32.mrf.mxu0
          %v784 = vadd.f32 %v635, %v783
          %v785 = vpop.f32.mrf.mxu0
          %v786 = vadd.f32 %v640, %v785
          %787 = vmatmul.bf16.gmra.mxu0 %v719
          %v788 = vpop.f32.mrf.mxu0
          %v789 = vadd.f32 %v645, %v788
          %v790 = vpop.f32.mrf.mxu0
          %v791 = vadd.f32 %v650, %v790
          %792 = vmatmul.bf16.gmra.mxu0 %v722
          %v793 = vpop.f32.mrf.mxu0
          %v794 = vadd.f32 %v655, %v793
          %v795 = vpop.f32.mrf.mxu0
          %v796 = vadd.f32 %v660, %v795
          %797 = vmatmul.bf16.gmra.mxu0 %v725
          %v798 = vpop.f32.mrf.mxu0
          %v799 = vadd.f32 %v665, %v798
          %v800 = vpop.f32.mrf.mxu0
          %v801 = vadd.f32 %v670, %v800
          %802 = vmatmul.bf16.gmra.mxu0 %v728
          %v803 = vpop.f32.mrf.mxu0
          %v804 = vadd.f32 %v675, %v803
          %v805 = vpop.f32.mrf.mxu0
          %v806 = vadd.f32 %v680, %v805
          %807 = vdwg.mxu0
          %808 = vxpose.xlu0.b32.start [1/16] %v740, 128
          %809 = vxpose.xlu0.b32.cont [2/16] %v742, 128
          %810 = vxpose.xlu0.b32.cont [3/16] %v745, 128
          %811 = vxpose.xlu0.b32.cont [4/16] %v747, 128
          %812 = vxpose.xlu0.b32.cont [5/16] 0.0, 128
          %813 = vxpose.xlu0.b32.cont [6/16] 0.0, 128
          %814 = vxpose.xlu0.b32.cont [7/16] 0.0, 128
          %815 = vxpose.xlu0.b32.cont [8/16] 0.0, 128
          %816 = vxpose.xlu0.b32.cont [9/16] 0.0, 128
          %817 = vxpose.xlu0.b32.cont [10/16] 0.0, 128
          %818 = vxpose.xlu0.b32.cont [11/16] 0.0, 128
          %819 = vxpose.xlu0.b32.cont [12/16] 0.0, 128
          %820 = vxpose.xlu0.b32.cont [13/16] 0.0, 128
          %821 = vxpose.xlu0.b32.cont [14/16] 0.0, 128
          %822 = vxpose.xlu0.b32.cont [15/16] 0.0, 128
          %823 = vxpose.xlu0.b32.end [16/16] 0.0, 128
          %v824 = vpop.trf.xlu0
          %v825 = vpop.trf.xlu0
          %v826 = vpop.trf.xlu0
          %v827 = vpop.trf.xlu0
          %v828 = vpop.trf.xlu0
          %v829 = vpop.trf.xlu0
          %v830 = vpop.trf.xlu0
          %v831 = vpop.trf.xlu0
          %v832 = vpop.trf.xlu0
          %v833 = vpop.trf.xlu0
          %v834 = vpop.trf.xlu0
          %v835 = vpop.trf.xlu0
          %v836 = vpop.trf.xlu0
          %v837 = vpop.trf.xlu0
          %v838 = vpop.trf.xlu0
          %v839 = vpop.trf.xlu0
          %840 = vxpose.xlu0.b32.start [1/16] %v779, 128
          %841 = vxpose.xlu0.b32.cont [2/16] %v781, 128
          %842 = vxpose.xlu0.b32.cont [3/16] %v784, 128
          %843 = vxpose.xlu0.b32.cont [4/16] %v786, 128
          %844 = vxpose.xlu0.b32.cont [5/16] 0.0, 128
          %845 = vxpose.xlu0.b32.cont [6/16] 0.0, 128
          %846 = vxpose.xlu0.b32.cont [7/16] 0.0, 128
          %847 = vxpose.xlu0.b32.cont [8/16] 0.0, 128
          %848 = vxpose.xlu0.b32.cont [9/16] 0.0, 128
          %849 = vxpose.xlu0.b32.cont [10/16] 0.0, 128
          %850 = vxpose.xlu0.b32.cont [11/16] 0.0, 128
          %851 = vxpose.xlu0.b32.cont [12/16] 0.0, 128
          %852 = vxpose.xlu0.b32.cont [13/16] 0.0, 128
          %853 = vxpose.xlu0.b32.cont [14/16] 0.0, 128
          %854 = vxpose.xlu0.b32.cont [15/16] 0.0, 128
          %855 = vxpose.xlu0.b32.end [16/16] 0.0, 128
          %v856 = vpop.trf.xlu0
          %v857 = vpop.trf.xlu0
          %v858 = vpop.trf.xlu0
          %v859 = vpop.trf.xlu0
          %v860 = vpop.trf.xlu0
          %v861 = vpop.trf.xlu0
          %v862 = vpop.trf.xlu0
          %v863 = vpop.trf.xlu0
          %v864 = vpop.trf.xlu0
          %v865 = vpop.trf.xlu0
          %v866 = vpop.trf.xlu0
          %v867 = vpop.trf.xlu0
          %v868 = vpop.trf.xlu0
          %v869 = vpop.trf.xlu0
          %v870 = vpop.trf.xlu0
          %v871 = vpop.trf.xlu0
          %v872 = vpack.c.bf16 %v824, %v824
          %v873 = vpack.c.bf16 %v825, %v825
          %v874 = vpack.c.bf16 %v826, %v826
          %v875 = vpack.c.bf16 %v827, %v827
          %v876 = vpack.c.bf16 %v828, %v828
          %v877 = vpack.c.bf16 %v829, %v829
          %v878 = vpack.c.bf16 %v830, %v830
          %v879 = vpack.c.bf16 %v831, %v831
          %v880 = vpack.c.bf16 %v832, %v832
          %v881 = vpack.c.bf16 %v833, %v833
          %v882 = vpack.c.bf16 %v834, %v834
          %v883 = vpack.c.bf16 %v835, %v835
          %v884 = vpack.c.bf16 %v836, %v836
          %v885 = vpack.c.bf16 %v837, %v837
          %v886 = vpack.c.bf16 %v838, %v838
          %v887 = vpack.c.bf16 %v839, %v839
          %v888 = vpack.c.bf16 %v856, %v856
          %v889 = vpack.c.bf16 %v857, %v857
          %v890 = vpack.c.bf16 %v858, %v858
          %v891 = vpack.c.bf16 %v859, %v859
          %v892 = vpack.c.bf16 %v860, %v860
          %v893 = vpack.c.bf16 %v861, %v861
          %v894 = vpack.c.bf16 %v862, %v862
          %v895 = vpack.c.bf16 %v863, %v863
          %v896 = vpack.c.bf16 %v864, %v864
          %v897 = vpack.c.bf16 %v865, %v865
          %v898 = vpack.c.bf16 %v866, %v866
          %v899 = vpack.c.bf16 %v867, %v867
          %v900 = vpack.c.bf16 %v868, %v868
          %v901 = vpack.c.bf16 %v869, %v869
          %v902 = vpack.c.bf16 %v870, %v870
          %v903 = vpack.c.bf16 %v871, %v871
          %vm904 = vcmask 257024
          %905 = vst.msk [vmem:[#allocation2] sm:$0xf] %vm904, %v872
          %906 = vst.msk [vmem:[#allocation2 + $0x4] sm:$0xf] %vm904, %v873
          %907 = vst.msk [vmem:[#allocation2 + $0x8] sm:$0xf] %vm904, %v874
          %908 = vst.msk [vmem:[#allocation2 + $0xc] sm:$0xf] %vm904, %v875
          %909 = vst.msk [vmem:[#allocation2 + $0x10] sm:$0xf] %vm904, %v876
          %910 = vst.msk [vmem:[#allocation2 + $0x14] sm:$0xf] %vm904, %v877
          %911 = vst.msk [vmem:[#allocation2 + $0x18] sm:$0xf] %vm904, %v878
          %912 = vst.msk [vmem:[#allocation2 + $0x1c] sm:$0xf] %vm904, %v879
          %913 = vst.msk [vmem:[#allocation2 + $0x20] sm:$0xf] %vm904, %v880
          %914 = vst.msk [vmem:[#allocation2 + $0x24] sm:$0xf] %vm904, %v881
          %915 = vst.msk [vmem:[#allocation2 + $0x28] sm:$0xf] %vm904, %v882
          %916 = vst.msk [vmem:[#allocation2 + $0x2c] sm:$0xf] %vm904, %v883
          %917 = vst.msk [vmem:[#allocation2 + $0x30] sm:$0xf] %vm904, %v884
          %918 = vst.msk [vmem:[#allocation2 + $0x34] sm:$0xf] %vm904, %v885
          %919 = vst.msk [vmem:[#allocation2 + $0x38] sm:$0xf] %vm904, %v886
          %920 = vst.msk [vmem:[#allocation2 + $0x3c] sm:$0xf] %vm904, %v887
          %921 = vst.msk [vmem:[#allocation2 + $0x40] sm:$0xf] %vm904, %v888
          %922 = vst.msk [vmem:[#allocation2 + $0x44] sm:$0xf] %vm904, %v889
          %923 = vst.msk [vmem:[#allocation2 + $0x48] sm:$0xf] %vm904, %v890
          %924 = vst.msk [vmem:[#allocation2 + $0x4c] sm:$0xf] %vm904, %v891
          %925 = vst.msk [vmem:[#allocation2 + $0x50] sm:$0xf] %vm904, %v892
          %926 = vst.msk [vmem:[#allocation2 + $0x54] sm:$0xf] %vm904, %v893
          %927 = vst.msk [vmem:[#allocation2 + $0x58] sm:$0xf] %vm904, %v894
          %928 = vst.msk [vmem:[#allocation2 + $0x5c] sm:$0xf] %vm904, %v895
          %929 = vst.msk [vmem:[#allocation2 + $0x60] sm:$0xf] %vm904, %v896
          %930 = vst.msk [vmem:[#allocation2 + $0x64] sm:$0xf] %vm904, %v897
          %931 = vst.msk [vmem:[#allocation2 + $0x68] sm:$0xf] %vm904, %v898
          %932 = vst.msk [vmem:[#allocation2 + $0x6c] sm:$0xf] %vm904, %v899
          %933 = vst.msk [vmem:[#allocation2 + $0x70] sm:$0xf] %vm904, %v900
          %934 = vst.msk [vmem:[#allocation2 + $0x74] sm:$0xf] %vm904, %v901
          %935 = vst.msk [vmem:[#allocation2 + $0x78] sm:$0xf] %vm904, %v902
          %936 = vst.msk [vmem:[#allocation2 + $0x7c] sm:$0xf] %vm904, %v903
          %v937 = vpack.c.bf16 %v789, %v750
          %v938 = vpack.c.bf16 %v791, %v752
          %v939 = vpack.c.bf16 %v794, %v755
          %v940 = vpack.c.bf16 %v796, %v757
          %v941 = vpack.c.bf16 %v799, %v760
          %v942 = vpack.c.bf16 %v801, %v762
          %v943 = vpack.c.bf16 %v804, %v765
          %v944 = vpack.c.bf16 %v806, %v767
          %945 = vst [vmem:[#allocation3] sm:$0xff] %v937
          %946 = vst [vmem:[#allocation3 + $0x8] sm:$0xff] %v938
          %947 = vst [vmem:[#allocation3 + $0x10] sm:$0xff] %v939
          %948 = vst [vmem:[#allocation3 + $0x18] sm:$0xff] %v940
          %949 = vst [vmem:[#allocation3 + $0x20] sm:$0xff] %v941
          %950 = vst [vmem:[#allocation3 + $0x28] sm:$0xff] %v942
          %951 = vst [vmem:[#allocation3 + $0x30] sm:$0xff] %v943
          %952 = vst [vmem:[#allocation3 + $0x38] sm:$0xff] %v944
        $region56: #{tpu_custom_call.1} parent=51 // pred_fallthru
          _
        %s953 = smul.u32 %s27, 256
        %s954 = sshra.s32 %s953, 3
        %s955 = sand.u32 %s953, 7
        %s956 = smul.addr %s954, 4
        %s957 = scalar_lea.vmem [#allocation2], %s956
        %v958 = vld [vmem:[%s957] sm:$0xf]
        %v959 = vld [vmem:[%s957 + $0x4] sm:$0xf]
        %v960 = vld [vmem:[%s957 + $0x8] sm:$0xf]
        %v961 = vld [vmem:[%s957 + $0xc] sm:$0xf]
        %v962 = vld [vmem:[%s957 + $0x10] sm:$0xf]
        %v963 = vld [vmem:[%s957 + $0x14] sm:$0xf]
        %v964 = vld [vmem:[%s957 + $0x18] sm:$0xf]
        %v965 = vld [vmem:[%s957 + $0x1c] sm:$0xf]
        %v966 = vld [vmem:[%s957 + $0x20] sm:$0xf]
        %v967 = vld [vmem:[%s957 + $0x24] sm:$0xf]
        %v968 = vld [vmem:[%s957 + $0x28] sm:$0xf]
        %v969 = vld [vmem:[%s957 + $0x2c] sm:$0xf]
        %v970 = vld [vmem:[%s957 + $0x30] sm:$0xf]
        %v971 = vld [vmem:[%s957 + $0x34] sm:$0xf]
        %v972 = vld [vmem:[%s957 + $0x38] sm:$0xf]
        %v973 = vld [vmem:[%s957 + $0x3c] sm:$0xf]
        %v974 = vld [vmem:[%s957 + $0x40] sm:$0xf]
        %v975 = vld [vmem:[%s957 + $0x44] sm:$0xf]
        %v976 = vld [vmem:[%s957 + $0x48] sm:$0xf]
        %v977 = vld [vmem:[%s957 + $0x4c] sm:$0xf]
        %v978 = vld [vmem:[%s957 + $0x50] sm:$0xf]
        %v979 = vld [vmem:[%s957 + $0x54] sm:$0xf]
        %v980 = vld [vmem:[%s957 + $0x58] sm:$0xf]
        %v981 = vld [vmem:[%s957 + $0x5c] sm:$0xf]
        %v982 = vld [vmem:[%s957 + $0x60] sm:$0xf]
        %v983 = vld [vmem:[%s957 + $0x64] sm:$0xf]
        %v984 = vld [vmem:[%s957 + $0x68] sm:$0xf]
        %v985 = vld [vmem:[%s957 + $0x6c] sm:$0xf]
        %v986 = vld [vmem:[%s957 + $0x70] sm:$0xf]
        %v987 = vld [vmem:[%s957 + $0x74] sm:$0xf]
        %v988 = vld [vmem:[%s957 + $0x78] sm:$0xf]
        %v989 = vld [vmem:[%s957 + $0x7c] sm:$0xf]
        %v990 = vld [vmem:[#allocation3] sm:$0xff]
        %v991 = vld [vmem:[#allocation3 + $0x8] sm:$0xff]
        %v992 = vld [vmem:[#allocation3 + $0x10] sm:$0xff]
        %v993 = vld [vmem:[#allocation3 + $0x18] sm:$0xff]
        %v994 = vld [vmem:[#allocation3 + $0x20] sm:$0xff]
        %v995 = vld [vmem:[#allocation3 + $0x28] sm:$0xff]
        %v996 = vld [vmem:[#allocation3 + $0x30] sm:$0xff]
        %v997 = vld [vmem:[#allocation3 + $0x38] sm:$0xff]
        %v1030 = vunpack.c.l.b16 %v958
        %v1031 = vunpack.c.l.b16 %v959
        %v1032 = vunpack.c.l.b16 %v960
        %v1033 = vunpack.c.l.b16 %v961
        %v1034 = vunpack.c.l.b16 %v962
        %v1035 = vunpack.c.l.b16 %v963
        %v1036 = vunpack.c.l.b16 %v964
        %v1037 = vunpack.c.l.b16 %v965
        %v1038 = vunpack.c.l.b16 %v966
        %v1039 = vunpack.c.l.b16 %v967
        %v1040 = vunpack.c.l.b16 %v968
        %v1041 = vunpack.c.l.b16 %v969
        %v1042 = vunpack.c.l.b16 %v970
        %v1043 = vunpack.c.l.b16 %v971
        %v1044 = vunpack.c.l.b16 %v972
        %v1045 = vunpack.c.l.b16 %v973
        %v1046 = vunpack.c.l.b16 %v974
        %v1047 = vunpack.c.l.b16 %v975
        %v1048 = vunpack.c.l.b16 %v976
        %v1049 = vunpack.c.l.b16 %v977
        %v1050 = vunpack.c.l.b16 %v978
        %v1051 = vunpack.c.l.b16 %v979
        %v1052 = vunpack.c.l.b16 %v980
        %v1053 = vunpack.c.l.b16 %v981
        %v1054 = vunpack.c.l.b16 %v982
        %v1055 = vunpack.c.l.b16 %v983
        %v1056 = vunpack.c.l.b16 %v984
        %v1057 = vunpack.c.l.b16 %v985
        %v1058 = vunpack.c.l.b16 %v986
        %v1059 = vunpack.c.l.b16 %v987
        %v1060 = vunpack.c.l.b16 %v988
        %v1061 = vunpack.c.l.b16 %v989
        %v1062 = vpack.c.b16 %v1031, %v1030
        %v1063 = vpack.c.b16 %v1033, %v1032
        %v1064 = vpack.c.b16 %v1035, %v1034
        %v1065 = vpack.c.b16 %v1037, %v1036
        %v1066 = vpack.c.b16 %v1039, %v1038
        %v1067 = vpack.c.b16 %v1041, %v1040
        %v1068 = vpack.c.b16 %v1043, %v1042
        %v1069 = vpack.c.b16 %v1045, %v1044
        %v1070 = vpack.c.b16 %v1047, %v1046
        %v1071 = vpack.c.b16 %v1049, %v1048
        %v1072 = vpack.c.b16 %v1051, %v1050
        %v1073 = vpack.c.b16 %v1053, %v1052
        %v1074 = vpack.c.b16 %v1055, %v1054
        %v1075 = vpack.c.b16 %v1057, %v1056
        %v1076 = vpack.c.b16 %v1059, %v1058
        %v1077 = vpack.c.b16 %v1061, %v1060
        %v1082 = vunpack.c.l.b16 %v990
        %v1083 = vunpack.c.h.b16 %v990
        %v1084 = vunpack.c.l.b16 %v991
        %v1085 = vunpack.c.h.b16 %v991
        %v1086 = vunpack.c.l.b16 %v992
        %v1087 = vunpack.c.h.b16 %v992
        %v1088 = vunpack.c.l.b16 %v993
        %v1089 = vunpack.c.h.b16 %v993
        %v1090 = vpack.c.b16 %v1084, %v1082
        %v1091 = vpack.c.b16 %v1085, %v1083
        %v1092 = vpack.c.b16 %v1088, %v1086
        %v1093 = vpack.c.b16 %v1089, %v1087
        %vm1098 = vcmask 261120
        %v1100 = vsel %vm1098, %v1062, 0
        %v1103 = vsel %vm1098, %v1063, 0
        %v1106 = vsel %vm1098, %v1064, 0
        %v1109 = vsel %vm1098, %v1065, 0
        %v1112 = vsel %vm1098, %v1066, 0
        %v1115 = vsel %vm1098, %v1067, 0
        %v1118 = vsel %vm1098, %v1068, 0
        %v1121 = vsel %vm1098, %v1069, 0
        %v1124 = vsel %vm1098, %v1070, 0
        %v1127 = vsel %vm1098, %v1071, 0
        %v1130 = vsel %vm1098, %v1072, 0
        %v1133 = vsel %vm1098, %v1073, 0
        %v1136 = vsel %vm1098, %v1074, 0
        %v1139 = vsel %vm1098, %v1075, 0
        %v1142 = vsel %vm1098, %v1076, 0
        %v1145 = vsel %vm1098, %v1077, 0
        %1147 = vmatpush.bf16.msra.mxu0 0
        %1148 = vmatpush.bf16.msra.mxu0 0
        %1149 = vmatpush.bf16.msra.mxu0 0
        %1150 = vmatpush.bf16.msra.mxu0 0
        %1151 = vmatpush.bf16.msra.mxu0 0
        %1152 = vmatpush.bf16.msra.mxu0 0
        %1153 = vmatpush.bf16.msra.mxu0 %v1092
        %1154 = vmatpush.bf16.msra.mxu0 %v1090
        %1155 = vmatmul.bf16.gmra.mxu0 %v1100
        %v1156 = vpop.f32.mrf.mxu0
        %v1157 = vadd.f32 0.0, %v1156
        %v1158 = vpop.f32.mrf.mxu0
        %v1159 = vadd.f32 0.0, %v1158
        %1160 = vmatmul.bf16.gmra.mxu0 %v1103
        %v1161 = vpop.f32.mrf.mxu0
        %v1162 = vadd.f32 0.0, %v1161
        %v1163 = vpop.f32.mrf.mxu0
        %v1164 = vadd.f32 0.0, %v1163
        %1165 = vmatmul.bf16.gmra.mxu0 %v1106
        %v1166 = vpop.f32.mrf.mxu0
        %v1167 = vadd.f32 0.0, %v1166
        %v1168 = vpop.f32.mrf.mxu0
        %v1169 = vadd.f32 0.0, %v1168
        %1170 = vmatmul.bf16.gmra.mxu0 %v1109
        %v1171 = vpop.f32.mrf.mxu0
        %v1172 = vadd.f32 0.0, %v1171
        %v1173 = vpop.f32.mrf.mxu0
        %v1174 = vadd.f32 0.0, %v1173
        %1175 = vmatmul.bf16.gmra.mxu0 %v1112
        %v1176 = vpop.f32.mrf.mxu0
        %v1177 = vadd.f32 0.0, %v1176
        %v1178 = vpop.f32.mrf.mxu0
        %v1179 = vadd.f32 0.0, %v1178
        %1180 = vmatmul.bf16.gmra.mxu0 %v1115
        %v1181 = vpop.f32.mrf.mxu0
        %v1182 = vadd.f32 0.0, %v1181
        %v1183 = vpop.f32.mrf.mxu0
        %v1184 = vadd.f32 0.0, %v1183
        %1185 = vmatmul.bf16.gmra.mxu0 %v1118
        %v1186 = vpop.f32.mrf.mxu0
        %v1187 = vadd.f32 0.0, %v1186
        %v1188 = vpop.f32.mrf.mxu0
        %v1189 = vadd.f32 0.0, %v1188
        %1190 = vmatmul.bf16.gmra.mxu0 %v1121
        %v1191 = vpop.f32.mrf.mxu0
        %v1192 = vadd.f32 0.0, %v1191
        %v1193 = vpop.f32.mrf.mxu0
        %v1194 = vadd.f32 0.0, %v1193
        %1195 = vmatmul.bf16.gmra.mxu0 %v1124
        %v1196 = vpop.f32.mrf.mxu0
        %v1197 = vadd.f32 0.0, %v1196
        %v1198 = vpop.f32.mrf.mxu0
        %v1199 = vadd.f32 0.0, %v1198
        %1200 = vmatmul.bf16.gmra.mxu0 %v1127
        %v1201 = vpop.f32.mrf.mxu0
        %v1202 = vadd.f32 0.0, %v1201
        %v1203 = vpop.f32.mrf.mxu0
        %v1204 = vadd.f32 0.0, %v1203
        %1205 = vmatmul.bf16.gmra.mxu0 %v1130
        %v1206 = vpop.f32.mrf.mxu0
        %v1207 = vadd.f32 0.0, %v1206
        %v1208 = vpop.f32.mrf.mxu0
        %v1209 = vadd.f32 0.0, %v1208
        %1210 = vmatmul.bf16.gmra.mxu0 %v1133
        %v1211 = vpop.f32.mrf.mxu0
        %v1212 = vadd.f32 0.0, %v1211
        %v1213 = vpop.f32.mrf.mxu0
        %v1214 = vadd.f32 0.0, %v1213
        %1215 = vmatmul.bf16.gmra.mxu0 %v1136
        %v1216 = vpop.f32.mrf.mxu0
        %v1217 = vadd.f32 0.0, %v1216
        %v1218 = vpop.f32.mrf.mxu0
        %v1219 = vadd.f32 0.0, %v1218
        %1220 = vmatmul.bf16.gmra.mxu0 %v1139
        %v1221 = vpop.f32.mrf.mxu0
        %v1222 = vadd.f32 0.0, %v1221
        %v1223 = vpop.f32.mrf.mxu0
        %v1224 = vadd.f32 0.0, %v1223
        %1225 = vmatmul.bf16.gmra.mxu0 %v1142
        %v1226 = vpop.f32.mrf.mxu0
        %v1227 = vadd.f32 0.0, %v1226
        %v1228 = vpop.f32.mrf.mxu0
        %v1229 = vadd.f32 0.0, %v1228
        %1230 = vmatmul.bf16.gmra.mxu0 %v1145
        %v1231 = vpop.f32.mrf.mxu0
        %v1232 = vadd.f32 0.0, %v1231
        %v1233 = vpop.f32.mrf.mxu0
        %v1234 = vadd.f32 0.0, %v1233
        %1235 = vdwg.mxu0
        %1236 = vmatpush.bf16.msra.mxu0 0
        %1237 = vmatpush.bf16.msra.mxu0 0
        %1238 = vmatpush.bf16.msra.mxu0 0
        %1239 = vmatpush.bf16.msra.mxu0 0
        %1240 = vmatpush.bf16.msra.mxu0 0
        %1241 = vmatpush.bf16.msra.mxu0 0
        %1242 = vmatpush.bf16.msra.mxu0 %v1093
        %1243 = vmatpush.bf16.msra.mxu0 %v1091
        %1244 = vmatmul.bf16.gmra.mxu0 %v1100
        %v1245 = vpop.f32.mrf.mxu0
        %v1246 = vadd.f32 0.0, %v1245
        %v1247 = vpop.f32.mrf.mxu0
        %v1248 = vadd.f32 0.0, %v1247
        %1249 = vmatmul.bf16.gmra.mxu0 %v1103
        %v1250 = vpop.f32.mrf.mxu0
        %v1251 = vadd.f32 0.0, %v1250
        %v1252 = vpop.f32.mrf.mxu0
        %v1253 = vadd.f32 0.0, %v1252
        %1254 = vmatmul.bf16.gmra.mxu0 %v1106
        %v1255 = vpop.f32.mrf.mxu0
        %v1256 = vadd.f32 0.0, %v1255
        %v1257 = vpop.f32.mrf.mxu0
        %v1258 = vadd.f32 0.0, %v1257
        %1259 = vmatmul.bf16.gmra.mxu0 %v1109
        %v1260 = vpop.f32.mrf.mxu0
        %v1261 = vadd.f32 0.0, %v1260
        %v1262 = vpop.f32.mrf.mxu0
        %v1263 = vadd.f32 0.0, %v1262
        %1264 = vmatmul.bf16.gmra.mxu0 %v1112
        %v1265 = vpop.f32.mrf.mxu0
        %v1266 = vadd.f32 0.0, %v1265
        %v1267 = vpop.f32.mrf.mxu0
        %v1268 = vadd.f32 0.0, %v1267
        %1269 = vmatmul.bf16.gmra.mxu0 %v1115
        %v1270 = vpop.f32.mrf.mxu0
        %v1271 = vadd.f32 0.0, %v1270
        %v1272 = vpop.f32.mrf.mxu0
        %v1273 = vadd.f32 0.0, %v1272
        %1274 = vmatmul.bf16.gmra.mxu0 %v1118
        %v1275 = vpop.f32.mrf.mxu0
        %v1276 = vadd.f32 0.0, %v1275
        %v1277 = vpop.f32.mrf.mxu0
        %v1278 = vadd.f32 0.0, %v1277
        %1279 = vmatmul.bf16.gmra.mxu0 %v1121
        %v1280 = vpop.f32.mrf.mxu0
        %v1281 = vadd.f32 0.0, %v1280
        %v1282 = vpop.f32.mrf.mxu0
        %v1283 = vadd.f32 0.0, %v1282
        %1284 = vmatmul.bf16.gmra.mxu0 %v1124
        %v1285 = vpop.f32.mrf.mxu0
        %v1286 = vadd.f32 0.0, %v1285
        %v1287 = vpop.f32.mrf.mxu0
        %v1288 = vadd.f32 0.0, %v1287
        %1289 = vmatmul.bf16.gmra.mxu0 %v1127
        %v1290 = vpop.f32.mrf.mxu0
        %v1291 = vadd.f32 0.0, %v1290
        %v1292 = vpop.f32.mrf.mxu0
        %v1293 = vadd.f32 0.0, %v1292
        %1294 = vmatmul.bf16.gmra.mxu0 %v1130
        %v1295 = vpop.f32.mrf.mxu0
        %v1296 = vadd.f32 0.0, %v1295
        %v1297 = vpop.f32.mrf.mxu0
        %v1298 = vadd.f32 0.0, %v1297
        %1299 = vmatmul.bf16.gmra.mxu0 %v1133
        %v1300 = vpop.f32.mrf.mxu0
        %v1301 = vadd.f32 0.0, %v1300
        %v1302 = vpop.f32.mrf.mxu0
        %v1303 = vadd.f32 0.0, %v1302
        %1304 = vmatmul.bf16.gmra.mxu0 %v1136
        %v1305 = vpop.f32.mrf.mxu0
        %v1306 = vadd.f32 0.0, %v1305
        %v1307 = vpop.f32.mrf.mxu0
        %v1308 = vadd.f32 0.0, %v1307
        %1309 = vmatmul.bf16.gmra.mxu0 %v1139
        %v1310 = vpop.f32.mrf.mxu0
        %v1311 = vadd.f32 0.0, %v1310
        %v1312 = vpop.f32.mrf.mxu0
        %v1313 = vadd.f32 0.0, %v1312
        %1314 = vmatmul.bf16.gmra.mxu0 %v1142
        %v1315 = vpop.f32.mrf.mxu0
        %v1316 = vadd.f32 0.0, %v1315
        %v1317 = vpop.f32.mrf.mxu0
        %v1318 = vadd.f32 0.0, %v1317
        %1319 = vmatmul.bf16.gmra.mxu0 %v1145
        %v1320 = vpop.f32.mrf.mxu0
        %v1321 = vadd.f32 0.0, %v1320
        %v1322 = vpop.f32.mrf.mxu0
        %v1323 = vadd.f32 0.0, %v1322
        %1324 = vdwg.mxu0
        %v1325 = vmax.f32 %v1157, %v1246
        %1326 = vmax.xlane.f32.xlu0 %v1325
        %v1327 = vpop.xlane.xlu0 %1326
        %v1328 = vmax.f32 %v1159, %v1248
        %1329 = vmax.xlane.f32.xlu0 %v1328
        %v1330 = vpop.xlane.xlu0 %1329
        %v1331 = vmax.f32 %v1162, %v1251
        %1332 = vmax.xlane.f32.xlu0 %v1331
        %v1333 = vpop.xlane.xlu0 %1332
        %v1334 = vmax.f32 %v1164, %v1253
        %1335 = vmax.xlane.f32.xlu0 %v1334
        %v1336 = vpop.xlane.xlu0 %1335
        %v1337 = vmax.f32 %v1167, %v1256
        %1338 = vmax.xlane.f32.xlu0 %v1337
        %v1339 = vpop.xlane.xlu0 %1338
        %v1340 = vmax.f32 %v1169, %v1258
        %1341 = vmax.xlane.f32.xlu0 %v1340
        %v1342 = vpop.xlane.xlu0 %1341
        %v1343 = vmax.f32 %v1172, %v1261
        %1344 = vmax.xlane.f32.xlu0 %v1343
        %v1345 = vpop.xlane.xlu0 %1344
        %v1346 = vmax.f32 %v1174, %v1263
        %1347 = vmax.xlane.f32.xlu0 %v1346
        %v1348 = vpop.xlane.xlu0 %1347
        %v1349 = vmax.f32 %v1177, %v1266
        %1350 = vmax.xlane.f32.xlu0 %v1349
        %v1351 = vpop.xlane.xlu0 %1350
        %v1352 = vmax.f32 %v1179, %v1268
        %1353 = vmax.xlane.f32.xlu0 %v1352
        %v1354 = vpop.xlane.xlu0 %1353
        %v1355 = vmax.f32 %v1182, %v1271
        %1356 = vmax.xlane.f32.xlu0 %v1355
        %v1357 = vpop.xlane.xlu0 %1356
        %v1358 = vmax.f32 %v1184, %v1273
        %1359 = vmax.xlane.f32.xlu0 %v1358
        %v1360 = vpop.xlane.xlu0 %1359
        %v1361 = vmax.f32 %v1187, %v1276
        %1362 = vmax.xlane.f32.xlu0 %v1361
        %v1363 = vpop.xlane.xlu0 %1362
        %v1364 = vmax.f32 %v1189, %v1278
        %1365 = vmax.xlane.f32.xlu0 %v1364
        %v1366 = vpop.xlane.xlu0 %1365
        %v1367 = vmax.f32 %v1192, %v1281
        %1368 = vmax.xlane.f32.xlu0 %v1367
        %v1369 = vpop.xlane.xlu0 %1368
        %v1370 = vmax.f32 %v1194, %v1283
        %1371 = vmax.xlane.f32.xlu0 %v1370
        %v1372 = vpop.xlane.xlu0 %1371
        %v1373 = vmax.f32 %v1197, %v1286
        %1374 = vmax.xlane.f32.xlu0 %v1373
        %v1375 = vpop.xlane.xlu0 %1374
        %v1376 = vmax.f32 %v1199, %v1288
        %1377 = vmax.xlane.f32.xlu0 %v1376
        %v1378 = vpop.xlane.xlu0 %1377
        %v1379 = vmax.f32 %v1202, %v1291
        %1380 = vmax.xlane.f32.xlu0 %v1379
        %v1381 = vpop.xlane.xlu0 %1380
        %v1382 = vmax.f32 %v1204, %v1293
        %1383 = vmax.xlane.f32.xlu0 %v1382
        %v1384 = vpop.xlane.xlu0 %1383
        %v1385 = vmax.f32 %v1207, %v1296
        %1386 = vmax.xlane.f32.xlu0 %v1385
        %v1387 = vpop.xlane.xlu0 %1386
        %v1388 = vmax.f32 %v1209, %v1298
        %1389 = vmax.xlane.f32.xlu0 %v1388
        %v1390 = vpop.xlane.xlu0 %1389
        %v1391 = vmax.f32 %v1212, %v1301
        %1392 = vmax.xlane.f32.xlu0 %v1391
        %v1393 = vpop.xlane.xlu0 %1392
        %v1394 = vmax.f32 %v1214, %v1303
        %1395 = vmax.xlane.f32.xlu0 %v1394
        %v1396 = vpop.xlane.xlu0 %1395
        %v1397 = vmax.f32 %v1217, %v1306
        %1398 = vmax.xlane.f32.xlu0 %v1397
        %v1399 = vpop.xlane.xlu0 %1398
        %v1400 = vmax.f32 %v1219, %v1308
        %1401 = vmax.xlane.f32.xlu0 %v1400
        %v1402 = vpop.xlane.xlu0 %1401
        %v1403 = vmax.f32 %v1222, %v1311
        %1404 = vmax.xlane.f32.xlu0 %v1403
        %v1405 = vpop.xlane.xlu0 %1404
        %v1406 = vmax.f32 %v1224, %v1313
        %1407 = vmax.xlane.f32.xlu0 %v1406
        %v1408 = vpop.xlane.xlu0 %1407
        %v1409 = vmax.f32 %v1227, %v1316
        %1410 = vmax.xlane.f32.xlu0 %v1409
        %v1411 = vpop.xlane.xlu0 %1410
        %v1412 = vmax.f32 %v1229, %v1318
        %1413 = vmax.xlane.f32.xlu0 %v1412
        %v1414 = vpop.xlane.xlu0 %1413
        %v1415 = vmax.f32 %v1232, %v1321
        %1416 = vmax.xlane.f32.xlu0 %v1415
        %v1417 = vpop.xlane.xlu0 %1416
        %v1418 = vmax.f32 %v1234, %v1323
        %1419 = vmax.xlane.f32.xlu0 %v1418
        %v1420 = vpop.xlane.xlu0 %1419
        %v1421 = vsub.f32 %v1157, %v1327
        %v1422 = vsub.f32 %v1246, %v1327
        %v1423 = vsub.f32 %v1159, %v1330
        %v1424 = vsub.f32 %v1248, %v1330
        %v1425 = vsub.f32 %v1162, %v1333
        %v1426 = vsub.f32 %v1251, %v1333
        %v1427 = vsub.f32 %v1164, %v1336
        %v1428 = vsub.f32 %v1253, %v1336
        %v1429 = vsub.f32 %v1167, %v1339
        %v1430 = vsub.f32 %v1256, %v1339
        %v1431 = vsub.f32 %v1169, %v1342
        %v1432 = vsub.f32 %v1258, %v1342
        %v1433 = vsub.f32 %v1172, %v1345
        %v1434 = vsub.f32 %v1261, %v1345
        %v1435 = vsub.f32 %v1174, %v1348
        %v1436 = vsub.f32 %v1263, %v1348
        %v1437 = vsub.f32 %v1177, %v1351
        %v1438 = vsub.f32 %v1266, %v1351
        %v1439 = vsub.f32 %v1179, %v1354
        %v1440 = vsub.f32 %v1268, %v1354
        %v1441 = vsub.f32 %v1182, %v1357
        %v1442 = vsub.f32 %v1271, %v1357
        %v1443 = vsub.f32 %v1184, %v1360
        %v1444 = vsub.f32 %v1273, %v1360
        %v1445 = vsub.f32 %v1187, %v1363
        %v1446 = vsub.f32 %v1276, %v1363
        %v1447 = vsub.f32 %v1189, %v1366
        %v1448 = vsub.f32 %v1278, %v1366
        %v1449 = vsub.f32 %v1192, %v1369
        %v1450 = vsub.f32 %v1281, %v1369
        %v1451 = vsub.f32 %v1194, %v1372
        %v1452 = vsub.f32 %v1283, %v1372
        %v1453 = vsub.f32 %v1197, %v1375
        %v1454 = vsub.f32 %v1286, %v1375
        %v1455 = vsub.f32 %v1199, %v1378
        %v1456 = vsub.f32 %v1288, %v1378
        %v1457 = vsub.f32 %v1202, %v1381
        %v1458 = vsub.f32 %v1291, %v1381
        %v1459 = vsub.f32 %v1204, %v1384
        %v1460 = vsub.f32 %v1293, %v1384
        %v1461 = vsub.f32 %v1207, %v1387
        %v1462 = vsub.f32 %v1296, %v1387
        %v1463 = vsub.f32 %v1209, %v1390
        %v1464 = vsub.f32 %v1298, %v1390
        %v1465 = vsub.f32 %v1212, %v1393
        %v1466 = vsub.f32 %v1301, %v1393
        %v1467 = vsub.f32 %v1214, %v1396
        %v1468 = vsub.f32 %v1303, %v1396
        %v1469 = vsub.f32 %v1217, %v1399
        %v1470 = vsub.f32 %v1306, %v1399
        %v1471 = vsub.f32 %v1219, %v1402
        %v1472 = vsub.f32 %v1308, %v1402
        %v1473 = vsub.f32 %v1222, %v1405
        %v1474 = vsub.f32 %v1311, %v1405
        %v1475 = vsub.f32 %v1224, %v1408
        %v1476 = vsub.f32 %v1313, %v1408
        %v1477 = vsub.f32 %v1227, %v1411
        %v1478 = vsub.f32 %v1316, %v1411
        %v1479 = vsub.f32 %v1229, %v1414
        %v1480 = vsub.f32 %v1318, %v1414
        %v1481 = vsub.f32 %v1232, %v1417
        %v1482 = vsub.f32 %v1321, %v1417
        %v1483 = vsub.f32 %v1234, %v1420
        %v1484 = vsub.f32 %v1323, %v1420
        %v1485 = vmul.f32 %v1421, 1.442695
        %v1486 = vpow.pop %v1485
        %v1487 = vmul.f32 %v1422, 1.442695
        %v1488 = vpow.pop %v1487
        %v1489 = vmul.f32 %v1423, 1.442695
        %v1490 = vpow.pop %v1489
        %v1491 = vmul.f32 %v1424, 1.442695
        %v1492 = vpow.pop %v1491
        %v1493 = vmul.f32 %v1425, 1.442695
        %v1494 = vpow.pop %v1493
        %v1495 = vmul.f32 %v1426, 1.442695
        %v1496 = vpow.pop %v1495
        %v1497 = vmul.f32 %v1427, 1.442695
        %v1498 = vpow.pop %v1497
        %v1499 = vmul.f32 %v1428, 1.442695
        %v1500 = vpow.pop %v1499
        %v1501 = vmul.f32 %v1429, 1.442695
        %v1502 = vpow.pop %v1501
        %v1503 = vmul.f32 %v1430, 1.442695
        %v1504 = vpow.pop %v1503
        %v1505 = vmul.f32 %v1431, 1.442695
        %v1506 = vpow.pop %v1505
        %v1507 = vmul.f32 %v1432, 1.442695
        %v1508 = vpow.pop %v1507
        %v1509 = vmul.f32 %v1433, 1.442695
        %v1510 = vpow.pop %v1509
        %v1511 = vmul.f32 %v1434, 1.442695
        %v1512 = vpow.pop %v1511
        %v1513 = vmul.f32 %v1435, 1.442695
        %v1514 = vpow.pop %v1513
        %v1515 = vmul.f32 %v1436, 1.442695
        %v1516 = vpow.pop %v1515
        %v1517 = vmul.f32 %v1437, 1.442695
        %v1518 = vpow.pop %v1517
        %v1519 = vmul.f32 %v1438, 1.442695
        %v1520 = vpow.pop %v1519
        %v1521 = vmul.f32 %v1439, 1.442695
        %v1522 = vpow.pop %v1521
        %v1523 = vmul.f32 %v1440, 1.442695
        %v1524 = vpow.pop %v1523
        %v1525 = vmul.f32 %v1441, 1.442695
        %v1526 = vpow.pop %v1525
        %v1527 = vmul.f32 %v1442, 1.442695
        %v1528 = vpow.pop %v1527
        %v1529 = vmul.f32 %v1443, 1.442695
        %v1530 = vpow.pop %v1529
        %v1531 = vmul.f32 %v1444, 1.442695
        %v1532 = vpow.pop %v1531
        %v1533 = vmul.f32 %v1445, 1.442695
        %v1534 = vpow.pop %v1533
        %v1535 = vmul.f32 %v1446, 1.442695
        %v1536 = vpow.pop %v1535
        %v1537 = vmul.f32 %v1447, 1.442695
        %v1538 = vpow.pop %v1537
        %v1539 = vmul.f32 %v1448, 1.442695
        %v1540 = vpow.pop %v1539
        %v1541 = vmul.f32 %v1449, 1.442695
        %v1542 = vpow.pop %v1541
        %v1543 = vmul.f32 %v1450, 1.442695
        %v1544 = vpow.pop %v1543
        %v1545 = vmul.f32 %v1451, 1.442695
        %v1546 = vpow.pop %v1545
        %v1547 = vmul.f32 %v1452, 1.442695
        %v1548 = vpow.pop %v1547
        %v1549 = vmul.f32 %v1453, 1.442695
        %v1550 = vpow.pop %v1549
        %v1551 = vmul.f32 %v1454, 1.442695
        %v1552 = vpow.pop %v1551
        %v1553 = vmul.f32 %v1455, 1.442695
        %v1554 = vpow.pop %v1553
        %v1555 = vmul.f32 %v1456, 1.442695
        %v1556 = vpow.pop %v1555
        %v1557 = vmul.f32 %v1457, 1.442695
        %v1558 = vpow.pop %v1557
        %v1559 = vmul.f32 %v1458, 1.442695
        %v1560 = vpow.pop %v1559
        %v1561 = vmul.f32 %v1459, 1.442695
        %v1562 = vpow.pop %v1561
        %v1563 = vmul.f32 %v1460, 1.442695
        %v1564 = vpow.pop %v1563
        %v1565 = vmul.f32 %v1461, 1.442695
        %v1566 = vpow.pop %v1565
        %v1567 = vmul.f32 %v1462, 1.442695
        %v1568 = vpow.pop %v1567
        %v1569 = vmul.f32 %v1463, 1.442695
        %v1570 = vpow.pop %v1569
        %v1571 = vmul.f32 %v1464, 1.442695
        %v1572 = vpow.pop %v1571
        %v1573 = vmul.f32 %v1465, 1.442695
        %v1574 = vpow.pop %v1573
        %v1575 = vmul.f32 %v1466, 1.442695
        %v1576 = vpow.pop %v1575
        %v1577 = vmul.f32 %v1467, 1.442695
        %v1578 = vpow.pop %v1577
        %v1579 = vmul.f32 %v1468, 1.442695
        %v1580 = vpow.pop %v1579
        %v1581 = vmul.f32 %v1469, 1.442695
        %v1582 = vpow.pop %v1581
        %v1583 = vmul.f32 %v1470, 1.442695
        %v1584 = vpow.pop %v1583
        %v1585 = vmul.f32 %v1471, 1.442695
        %v1586 = vpow.pop %v1585
        %v1587 = vmul.f32 %v1472, 1.442695
        %v1588 = vpow.pop %v1587
        %v1589 = vmul.f32 %v1473, 1.442695
        %v1590 = vpow.pop %v1589
        %v1591 = vmul.f32 %v1474, 1.442695
        %v1592 = vpow.pop %v1591
        %v1593 = vmul.f32 %v1475, 1.442695
        %v1594 = vpow.pop %v1593
        %v1595 = vmul.f32 %v1476, 1.442695
        %v1596 = vpow.pop %v1595
        %v1597 = vmul.f32 %v1477, 1.442695
        %v1598 = vpow.pop %v1597
        %v1599 = vmul.f32 %v1478, 1.442695
        %v1600 = vpow.pop %v1599
        %v1601 = vmul.f32 %v1479, 1.442695
        %v1602 = vpow.pop %v1601
        %v1603 = vmul.f32 %v1480, 1.442695
        %v1604 = vpow.pop %v1603
        %v1605 = vmul.f32 %v1481, 1.442695
        %v1606 = vpow.pop %v1605
        %v1607 = vmul.f32 %v1482, 1.442695
        %v1608 = vpow.pop %v1607
        %v1609 = vmul.f32 %v1483, 1.442695
        %v1610 = vpow.pop %v1609
        %v1611 = vmul.f32 %v1484, 1.442695
        %v1612 = vpow.pop %v1611
        %v1613 = vadd.f32 %v1486, %v1488
        %1614 = vadd.xlane.f32.xlu0 %v1613
        %v1615 = vpop.xlane.xlu0 %1614
        %v1616 = vadd.f32 %v1490, %v1492
        %1617 = vadd.xlane.f32.xlu0 %v1616
        %v1618 = vpop.xlane.xlu0 %1617
        %v1619 = vadd.f32 %v1494, %v1496
        %1620 = vadd.xlane.f32.xlu0 %v1619
        %v1621 = vpop.xlane.xlu0 %1620
        %v1622 = vadd.f32 %v1498, %v1500
        %1623 = vadd.xlane.f32.xlu0 %v1622
        %v1624 = vpop.xlane.xlu0 %1623
        %v1625 = vadd.f32 %v1502, %v1504
        %1626 = vadd.xlane.f32.xlu0 %v1625
        %v1627 = vpop.xlane.xlu0 %1626
        %v1628 = vadd.f32 %v1506, %v1508
        %1629 = vadd.xlane.f32.xlu0 %v1628
        %v1630 = vpop.xlane.xlu0 %1629
        %v1631 = vadd.f32 %v1510, %v1512
        %1632 = vadd.xlane.f32.xlu0 %v1631
        %v1633 = vpop.xlane.xlu0 %1632
        %v1634 = vadd.f32 %v1514, %v1516
        %1635 = vadd.xlane.f32.xlu0 %v1634
        %v1636 = vpop.xlane.xlu0 %1635
        %v1637 = vadd.f32 %v1518, %v1520
        %1638 = vadd.xlane.f32.xlu0 %v1637
        %v1639 = vpop.xlane.xlu0 %1638
        %v1640 = vadd.f32 %v1522, %v1524
        %1641 = vadd.xlane.f32.xlu0 %v1640
        %v1642 = vpop.xlane.xlu0 %1641
        %v1643 = vadd.f32 %v1526, %v1528
        %1644 = vadd.xlane.f32.xlu0 %v1643
        %v1645 = vpop.xlane.xlu0 %1644
        %v1646 = vadd.f32 %v1530, %v1532
        %1647 = vadd.xlane.f32.xlu0 %v1646
        %v1648 = vpop.xlane.xlu0 %1647
        %v1649 = vadd.f32 %v1534, %v1536
        %1650 = vadd.xlane.f32.xlu0 %v1649
        %v1651 = vpop.xlane.xlu0 %1650
        %v1652 = vadd.f32 %v1538, %v1540
        %1653 = vadd.xlane.f32.xlu0 %v1652
        %v1654 = vpop.xlane.xlu0 %1653
        %v1655 = vadd.f32 %v1542, %v1544
        %1656 = vadd.xlane.f32.xlu0 %v1655
        %v1657 = vpop.xlane.xlu0 %1656
        %v1658 = vadd.f32 %v1546, %v1548
        %1659 = vadd.xlane.f32.xlu0 %v1658
        %v1660 = vpop.xlane.xlu0 %1659
        %v1661 = vadd.f32 %v1550, %v1552
        %1662 = vadd.xlane.f32.xlu0 %v1661
        %v1663 = vpop.xlane.xlu0 %1662
        %v1664 = vadd.f32 %v1554, %v1556
        %1665 = vadd.xlane.f32.xlu0 %v1664
        %v1666 = vpop.xlane.xlu0 %1665
        %v1667 = vadd.f32 %v1558, %v1560
        %1668 = vadd.xlane.f32.xlu0 %v1667
        %v1669 = vpop.xlane.xlu0 %1668
        %v1670 = vadd.f32 %v1562, %v1564
        %1671 = vadd.xlane.f32.xlu0 %v1670
        %v1672 = vpop.xlane.xlu0 %1671
        %v1673 = vadd.f32 %v1566, %v1568
        %1674 = vadd.xlane.f32.xlu0 %v1673
        %v1675 = vpop.xlane.xlu0 %1674
        %v1676 = vadd.f32 %v1570, %v1572
        %1677 = vadd.xlane.f32.xlu0 %v1676
        %v1678 = vpop.xlane.xlu0 %1677
        %v1679 = vadd.f32 %v1574, %v1576
        %1680 = vadd.xlane.f32.xlu0 %v1679
        %v1681 = vpop.xlane.xlu0 %1680
        %v1682 = vadd.f32 %v1578, %v1580
        %1683 = vadd.xlane.f32.xlu0 %v1682
        %v1684 = vpop.xlane.xlu0 %1683
        %v1685 = vadd.f32 %v1582, %v1584
        %1686 = vadd.xlane.f32.xlu0 %v1685
        %v1687 = vpop.xlane.xlu0 %1686
        %v1688 = vadd.f32 %v1586, %v1588
        %1689 = vadd.xlane.f32.xlu0 %v1688
        %v1690 = vpop.xlane.xlu0 %1689
        %v1691 = vadd.f32 %v1590, %v1592
        %1692 = vadd.xlane.f32.xlu0 %v1691
        %v1693 = vpop.xlane.xlu0 %1692
        %v1694 = vadd.f32 %v1594, %v1596
        %1695 = vadd.xlane.f32.xlu0 %v1694
        %v1696 = vpop.xlane.xlu0 %1695
        %v1697 = vadd.f32 %v1598, %v1600
        %1698 = vadd.xlane.f32.xlu0 %v1697
        %v1699 = vpop.xlane.xlu0 %1698
        %v1700 = vadd.f32 %v1602, %v1604
        %1701 = vadd.xlane.f32.xlu0 %v1700
        %v1702 = vpop.xlane.xlu0 %1701
        %v1703 = vadd.f32 %v1606, %v1608
        %1704 = vadd.xlane.f32.xlu0 %v1703
        %v1705 = vpop.xlane.xlu0 %1704
        %v1706 = vadd.f32 %v1610, %v1612
        %1707 = vadd.xlane.f32.xlu0 %v1706
        %v1708 = vpop.xlane.xlu0 %1707
        %v1709 = vrcp.pop %v1615
        %v1710 = vmul.f32 %v1615, %v1709
        %v1711 = vsub.f32 1.0, %v1710
        %v1712 = vmul.f32 %v1709, %v1711
        %v1713 = vadd.f32 %v1709, %v1712
        %vm1714 = vweird.f32 %v1615
        %vm1715 = vweird.f32 %v1709
        %vm1716 = vmor %vm1714, %vm1715
        %v1717 = vsel %vm1716, %v1709, %v1713
        %v1718 = vand.u32 2147483647, %v1615
        %vm1719 = vcmp.eq.f32.partialorder %v1718, 8.507059e+37
        %v1720 = vand.u32 %v1615, 2147483648
        %v1721 = vor.u32 1.1754944e-38, %v1720
        %v1722 = vsel %vm1719, %v1721, %v1717
        %v1723 = vmul.f32 1.0, %v1722
        %v1724 = vrcp.pop %v1618
        %v1725 = vmul.f32 %v1618, %v1724
        %v1726 = vsub.f32 1.0, %v1725
        %v1727 = vmul.f32 %v1724, %v1726
        %v1728 = vadd.f32 %v1724, %v1727
        %vm1729 = vweird.f32 %v1618
        %vm1730 = vweird.f32 %v1724
        %vm1731 = vmor %vm1729, %vm1730
        %v1732 = vsel %vm1731, %v1724, %v1728
        %v1733 = vand.u32 2147483647, %v1618
        %vm1734 = vcmp.eq.f32.partialorder %v1733, 8.507059e+37
        %v1735 = vand.u32 %v1618, 2147483648
        %v1736 = vor.u32 1.1754944e-38, %v1735
        %v1737 = vsel %vm1734, %v1736, %v1732
        %v1738 = vmul.f32 1.0, %v1737
        %v1739 = vrcp.pop %v1621
        %v1740 = vmul.f32 %v1621, %v1739
        %v1741 = vsub.f32 1.0, %v1740
        %v1742 = vmul.f32 %v1739, %v1741
        %v1743 = vadd.f32 %v1739, %v1742
        %vm1744 = vweird.f32 %v1621
        %vm1745 = vweird.f32 %v1739
        %vm1746 = vmor %vm1744, %vm1745
        %v1747 = vsel %vm1746, %v1739, %v1743
        %v1748 = vand.u32 2147483647, %v1621
        %vm1749 = vcmp.eq.f32.partialorder %v1748, 8.507059e+37
        %v1750 = vand.u32 %v1621, 2147483648
        %v1751 = vor.u32 1.1754944e-38, %v1750
        %v1752 = vsel %vm1749, %v1751, %v1747
        %v1753 = vmul.f32 1.0, %v1752
        %v1754 = vrcp.pop %v1624
        %v1755 = vmul.f32 %v1624, %v1754
        %v1756 = vsub.f32 1.0, %v1755
        %v1757 = vmul.f32 %v1754, %v1756
        %v1758 = vadd.f32 %v1754, %v1757
        %vm1759 = vweird.f32 %v1624
        %vm1760 = vweird.f32 %v1754
        %vm1761 = vmor %vm1759, %vm1760
        %v1762 = vsel %vm1761, %v1754, %v1758
        %v1763 = vand.u32 2147483647, %v1624
        %vm1764 = vcmp.eq.f32.partialorder %v1763, 8.507059e+37
        %v1765 = vand.u32 %v1624, 2147483648
        %v1766 = vor.u32 1.1754944e-38, %v1765
        %v1767 = vsel %vm1764, %v1766, %v1762
        %v1768 = vmul.f32 1.0, %v1767
        %v1769 = vrcp.pop %v1627
        %v1770 = vmul.f32 %v1627, %v1769
        %v1771 = vsub.f32 1.0, %v1770
        %v1772 = vmul.f32 %v1769, %v1771
        %v1773 = vadd.f32 %v1769, %v1772
        %vm1774 = vweird.f32 %v1627
        %vm1775 = vweird.f32 %v1769
        %vm1776 = vmor %vm1774, %vm1775
        %v1777 = vsel %vm1776, %v1769, %v1773
        %v1778 = vand.u32 2147483647, %v1627
        %vm1779 = vcmp.eq.f32.partialorder %v1778, 8.507059e+37
        %v1780 = vand.u32 %v1627, 2147483648
        %v1781 = vor.u32 1.1754944e-38, %v1780
        %v1782 = vsel %vm1779, %v1781, %v1777
        %v1783 = vmul.f32 1.0, %v1782
        %v1784 = vrcp.pop %v1630
        %v1785 = vmul.f32 %v1630, %v1784
        %v1786 = vsub.f32 1.0, %v1785
        %v1787 = vmul.f32 %v1784, %v1786
        %v1788 = vadd.f32 %v1784, %v1787
        %vm1789 = vweird.f32 %v1630
        %vm1790 = vweird.f32 %v1784
        %vm1791 = vmor %vm1789, %vm1790
        %v1792 = vsel %vm1791, %v1784, %v1788
        %v1793 = vand.u32 2147483647, %v1630
        %vm1794 = vcmp.eq.f32.partialorder %v1793, 8.507059e+37
        %v1795 = vand.u32 %v1630, 2147483648
        %v1796 = vor.u32 1.1754944e-38, %v1795
        %v1797 = vsel %vm1794, %v1796, %v1792
        %v1798 = vmul.f32 1.0, %v1797
        %v1799 = vrcp.pop %v1633
        %v1800 = vmul.f32 %v1633, %v1799
        %v1801 = vsub.f32 1.0, %v1800
        %v1802 = vmul.f32 %v1799, %v1801
        %v1803 = vadd.f32 %v1799, %v1802
        %vm1804 = vweird.f32 %v1633
        %vm1805 = vweird.f32 %v1799
        %vm1806 = vmor %vm1804, %vm1805
        %v1807 = vsel %vm1806, %v1799, %v1803
        %v1808 = vand.u32 2147483647, %v1633
        %vm1809 = vcmp.eq.f32.partialorder %v1808, 8.507059e+37
        %v1810 = vand.u32 %v1633, 2147483648
        %v1811 = vor.u32 1.1754944e-38, %v1810
        %v1812 = vsel %vm1809, %v1811, %v1807
        %v1813 = vmul.f32 1.0, %v1812
        %v1814 = vrcp.pop %v1636
        %v1815 = vmul.f32 %v1636, %v1814
        %v1816 = vsub.f32 1.0, %v1815
        %v1817 = vmul.f32 %v1814, %v1816
        %v1818 = vadd.f32 %v1814, %v1817
        %vm1819 = vweird.f32 %v1636
        %vm1820 = vweird.f32 %v1814
        %vm1821 = vmor %vm1819, %vm1820
        %v1822 = vsel %vm1821, %v1814, %v1818
        %v1823 = vand.u32 2147483647, %v1636
        %vm1824 = vcmp.eq.f32.partialorder %v1823, 8.507059e+37
        %v1825 = vand.u32 %v1636, 2147483648
        %v1826 = vor.u32 1.1754944e-38, %v1825
        %v1827 = vsel %vm1824, %v1826, %v1822
        %v1828 = vmul.f32 1.0, %v1827
        %v1829 = vrcp.pop %v1639
        %v1830 = vmul.f32 %v1639, %v1829
        %v1831 = vsub.f32 1.0, %v1830
        %v1832 = vmul.f32 %v1829, %v1831
        %v1833 = vadd.f32 %v1829, %v1832
        %vm1834 = vweird.f32 %v1639
        %vm1835 = vweird.f32 %v1829
        %vm1836 = vmor %vm1834, %vm1835
        %v1837 = vsel %vm1836, %v1829, %v1833
        %v1838 = vand.u32 2147483647, %v1639
        %vm1839 = vcmp.eq.f32.partialorder %v1838, 8.507059e+37
        %v1840 = vand.u32 %v1639, 2147483648
        %v1841 = vor.u32 1.1754944e-38, %v1840
        %v1842 = vsel %vm1839, %v1841, %v1837
        %v1843 = vmul.f32 1.0, %v1842
        %v1844 = vrcp.pop %v1642
        %v1845 = vmul.f32 %v1642, %v1844
        %v1846 = vsub.f32 1.0, %v1845
        %v1847 = vmul.f32 %v1844, %v1846
        %v1848 = vadd.f32 %v1844, %v1847
        %vm1849 = vweird.f32 %v1642
        %vm1850 = vweird.f32 %v1844
        %vm1851 = vmor %vm1849, %vm1850
        %v1852 = vsel %vm1851, %v1844, %v1848
        %v1853 = vand.u32 2147483647, %v1642
        %vm1854 = vcmp.eq.f32.partialorder %v1853, 8.507059e+37
        %v1855 = vand.u32 %v1642, 2147483648
        %v1856 = vor.u32 1.1754944e-38, %v1855
        %v1857 = vsel %vm1854, %v1856, %v1852
        %v1858 = vmul.f32 1.0, %v1857
        %v1859 = vrcp.pop %v1645
        %v1860 = vmul.f32 %v1645, %v1859
        %v1861 = vsub.f32 1.0, %v1860
        %v1862 = vmul.f32 %v1859, %v1861
        %v1863 = vadd.f32 %v1859, %v1862
        %vm1864 = vweird.f32 %v1645
        %vm1865 = vweird.f32 %v1859
        %vm1866 = vmor %vm1864, %vm1865
        %v1867 = vsel %vm1866, %v1859, %v1863
        %v1868 = vand.u32 2147483647, %v1645
        %vm1869 = vcmp.eq.f32.partialorder %v1868, 8.507059e+37
        %v1870 = vand.u32 %v1645, 2147483648
        %v1871 = vor.u32 1.1754944e-38, %v1870
        %v1872 = vsel %vm1869, %v1871, %v1867
        %v1873 = vmul.f32 1.0, %v1872
        %v1874 = vrcp.pop %v1648
        %v1875 = vmul.f32 %v1648, %v1874
        %v1876 = vsub.f32 1.0, %v1875
        %v1877 = vmul.f32 %v1874, %v1876
        %v1878 = vadd.f32 %v1874, %v1877
        %vm1879 = vweird.f32 %v1648
        %vm1880 = vweird.f32 %v1874
        %vm1881 = vmor %vm1879, %vm1880
        %v1882 = vsel %vm1881, %v1874, %v1878
        %v1883 = vand.u32 2147483647, %v1648
        %vm1884 = vcmp.eq.f32.partialorder %v1883, 8.507059e+37
        %v1885 = vand.u32 %v1648, 2147483648
        %v1886 = vor.u32 1.1754944e-38, %v1885
        %v1887 = vsel %vm1884, %v1886, %v1882
        %v1888 = vmul.f32 1.0, %v1887
        %v1889 = vrcp.pop %v1651
        %v1890 = vmul.f32 %v1651, %v1889
        %v1891 = vsub.f32 1.0, %v1890
        %v1892 = vmul.f32 %v1889, %v1891
        %v1893 = vadd.f32 %v1889, %v1892
        %vm1894 = vweird.f32 %v1651
        %vm1895 = vweird.f32 %v1889
        %vm1896 = vmor %vm1894, %vm1895
        %v1897 = vsel %vm1896, %v1889, %v1893
        %v1898 = vand.u32 2147483647, %v1651
        %vm1899 = vcmp.eq.f32.partialorder %v1898, 8.507059e+37
        %v1900 = vand.u32 %v1651, 2147483648
        %v1901 = vor.u32 1.1754944e-38, %v1900
        %v1902 = vsel %vm1899, %v1901, %v1897
        %v1903 = vmul.f32 1.0, %v1902
        %v1904 = vrcp.pop %v1654
        %v1905 = vmul.f32 %v1654, %v1904
        %v1906 = vsub.f32 1.0, %v1905
        %v1907 = vmul.f32 %v1904, %v1906
        %v1908 = vadd.f32 %v1904, %v1907
        %vm1909 = vweird.f32 %v1654
        %vm1910 = vweird.f32 %v1904
        %vm1911 = vmor %vm1909, %vm1910
        %v1912 = vsel %vm1911, %v1904, %v1908
        %v1913 = vand.u32 2147483647, %v1654
        %vm1914 = vcmp.eq.f32.partialorder %v1913, 8.507059e+37
        %v1915 = vand.u32 %v1654, 2147483648
        %v1916 = vor.u32 1.1754944e-38, %v1915
        %v1917 = vsel %vm1914, %v1916, %v1912
        %v1918 = vmul.f32 1.0, %v1917
        %v1919 = vrcp.pop %v1657
        %v1920 = vmul.f32 %v1657, %v1919
        %v1921 = vsub.f32 1.0, %v1920
        %v1922 = vmul.f32 %v1919, %v1921
        %v1923 = vadd.f32 %v1919, %v1922
        %vm1924 = vweird.f32 %v1657
        %vm1925 = vweird.f32 %v1919
        %vm1926 = vmor %vm1924, %vm1925
        %v1927 = vsel %vm1926, %v1919, %v1923
        %v1928 = vand.u32 2147483647, %v1657
        %vm1929 = vcmp.eq.f32.partialorder %v1928, 8.507059e+37
        %v1930 = vand.u32 %v1657, 2147483648
        %v1931 = vor.u32 1.1754944e-38, %v1930
        %v1932 = vsel %vm1929, %v1931, %v1927
        %v1933 = vmul.f32 1.0, %v1932
        %v1934 = vrcp.pop %v1660
        %v1935 = vmul.f32 %v1660, %v1934
        %v1936 = vsub.f32 1.0, %v1935
        %v1937 = vmul.f32 %v1934, %v1936
        %v1938 = vadd.f32 %v1934, %v1937
        %vm1939 = vweird.f32 %v1660
        %vm1940 = vweird.f32 %v1934
        %vm1941 = vmor %vm1939, %vm1940
        %v1942 = vsel %vm1941, %v1934, %v1938
        %v1943 = vand.u32 2147483647, %v1660
        %vm1944 = vcmp.eq.f32.partialorder %v1943, 8.507059e+37
        %v1945 = vand.u32 %v1660, 2147483648
        %v1946 = vor.u32 1.1754944e-38, %v1945
        %v1947 = vsel %vm1944, %v1946, %v1942
        %v1948 = vmul.f32 1.0, %v1947
        %v1949 = vrcp.pop %v1663
        %v1950 = vmul.f32 %v1663, %v1949
        %v1951 = vsub.f32 1.0, %v1950
        %v1952 = vmul.f32 %v1949, %v1951
        %v1953 = vadd.f32 %v1949, %v1952
        %vm1954 = vweird.f32 %v1663
        %vm1955 = vweird.f32 %v1949
        %vm1956 = vmor %vm1954, %vm1955
        %v1957 = vsel %vm1956, %v1949, %v1953
        %v1958 = vand.u32 2147483647, %v1663
        %vm1959 = vcmp.eq.f32.partialorder %v1958, 8.507059e+37
        %v1960 = vand.u32 %v1663, 2147483648
        %v1961 = vor.u32 1.1754944e-38, %v1960
        %v1962 = vsel %vm1959, %v1961, %v1957
        %v1963 = vmul.f32 1.0, %v1962
        %v1964 = vrcp.pop %v1666
        %v1965 = vmul.f32 %v1666, %v1964
        %v1966 = vsub.f32 1.0, %v1965
        %v1967 = vmul.f32 %v1964, %v1966
        %v1968 = vadd.f32 %v1964, %v1967
        %vm1969 = vweird.f32 %v1666
        %vm1970 = vweird.f32 %v1964
        %vm1971 = vmor %vm1969, %vm1970
        %v1972 = vsel %vm1971, %v1964, %v1968
        %v1973 = vand.u32 2147483647, %v1666
        %vm1974 = vcmp.eq.f32.partialorder %v1973, 8.507059e+37
        %v1975 = vand.u32 %v1666, 2147483648
        %v1976 = vor.u32 1.1754944e-38, %v1975
        %v1977 = vsel %vm1974, %v1976, %v1972
        %v1978 = vmul.f32 1.0, %v1977
        %v1979 = vrcp.pop %v1669
        %v1980 = vmul.f32 %v1669, %v1979
        %v1981 = vsub.f32 1.0, %v1980
        %v1982 = vmul.f32 %v1979, %v1981
        %v1983 = vadd.f32 %v1979, %v1982
        %vm1984 = vweird.f32 %v1669
        %vm1985 = vweird.f32 %v1979
        %vm1986 = vmor %vm1984, %vm1985
        %v1987 = vsel %vm1986, %v1979, %v1983
        %v1988 = vand.u32 2147483647, %v1669
        %vm1989 = vcmp.eq.f32.partialorder %v1988, 8.507059e+37
        %v1990 = vand.u32 %v1669, 2147483648
        %v1991 = vor.u32 1.1754944e-38, %v1990
        %v1992 = vsel %vm1989, %v1991, %v1987
        %v1993 = vmul.f32 1.0, %v1992
        %v1994 = vrcp.pop %v1672
        %v1995 = vmul.f32 %v1672, %v1994
        %v1996 = vsub.f32 1.0, %v1995
        %v1997 = vmul.f32 %v1994, %v1996
        %v1998 = vadd.f32 %v1994, %v1997
        %vm1999 = vweird.f32 %v1672
        %vm2000 = vweird.f32 %v1994
        %vm2001 = vmor %vm1999, %vm2000
        %v2002 = vsel %vm2001, %v1994, %v1998
        %v2003 = vand.u32 2147483647, %v1672
        %vm2004 = vcmp.eq.f32.partialorder %v2003, 8.507059e+37
        %v2005 = vand.u32 %v1672, 2147483648
        %v2006 = vor.u32 1.1754944e-38, %v2005
        %v2007 = vsel %vm2004, %v2006, %v2002
        %v2008 = vmul.f32 1.0, %v2007
        %v2009 = vrcp.pop %v1675
        %v2010 = vmul.f32 %v1675, %v2009
        %v2011 = vsub.f32 1.0, %v2010
        %v2012 = vmul.f32 %v2009, %v2011
        %v2013 = vadd.f32 %v2009, %v2012
        %vm2014 = vweird.f32 %v1675
        %vm2015 = vweird.f32 %v2009
        %vm2016 = vmor %vm2014, %vm2015
        %v2017 = vsel %vm2016, %v2009, %v2013
        %v2018 = vand.u32 2147483647, %v1675
        %vm2019 = vcmp.eq.f32.partialorder %v2018, 8.507059e+37
        %v2020 = vand.u32 %v1675, 2147483648
        %v2021 = vor.u32 1.1754944e-38, %v2020
        %v2022 = vsel %vm2019, %v2021, %v2017
        %v2023 = vmul.f32 1.0, %v2022
        %v2024 = vrcp.pop %v1678
        %v2025 = vmul.f32 %v1678, %v2024
        %v2026 = vsub.f32 1.0, %v2025
        %v2027 = vmul.f32 %v2024, %v2026
        %v2028 = vadd.f32 %v2024, %v2027
        %vm2029 = vweird.f32 %v1678
        %vm2030 = vweird.f32 %v2024
        %vm2031 = vmor %vm2029, %vm2030
        %v2032 = vsel %vm2031, %v2024, %v2028
        %v2033 = vand.u32 2147483647, %v1678
        %vm2034 = vcmp.eq.f32.partialorder %v2033, 8.507059e+37
        %v2035 = vand.u32 %v1678, 2147483648
        %v2036 = vor.u32 1.1754944e-38, %v2035
        %v2037 = vsel %vm2034, %v2036, %v2032
        %v2038 = vmul.f32 1.0, %v2037
        %v2039 = vrcp.pop %v1681
        %v2040 = vmul.f32 %v1681, %v2039
        %v2041 = vsub.f32 1.0, %v2040
        %v2042 = vmul.f32 %v2039, %v2041
        %v2043 = vadd.f32 %v2039, %v2042
        %vm2044 = vweird.f32 %v1681
        %vm2045 = vweird.f32 %v2039
        %vm2046 = vmor %vm2044, %vm2045
        %v2047 = vsel %vm2046, %v2039, %v2043
        %v2048 = vand.u32 2147483647, %v1681
        %vm2049 = vcmp.eq.f32.partialorder %v2048, 8.507059e+37
        %v2050 = vand.u32 %v1681, 2147483648
        %v2051 = vor.u32 1.1754944e-38, %v2050
        %v2052 = vsel %vm2049, %v2051, %v2047
        %v2053 = vmul.f32 1.0, %v2052
        %v2054 = vrcp.pop %v1684
        %v2055 = vmul.f32 %v1684, %v2054
        %v2056 = vsub.f32 1.0, %v2055
        %v2057 = vmul.f32 %v2054, %v2056
        %v2058 = vadd.f32 %v2054, %v2057
        %vm2059 = vweird.f32 %v1684
        %vm2060 = vweird.f32 %v2054
        %vm2061 = vmor %vm2059, %vm2060
        %v2062 = vsel %vm2061, %v2054, %v2058
        %v2063 = vand.u32 2147483647, %v1684
        %vm2064 = vcmp.eq.f32.partialorder %v2063, 8.507059e+37
        %v2065 = vand.u32 %v1684, 2147483648
        %v2066 = vor.u32 1.1754944e-38, %v2065
        %v2067 = vsel %vm2064, %v2066, %v2062
        %v2068 = vmul.f32 1.0, %v2067
        %v2069 = vrcp.pop %v1687
        %v2070 = vmul.f32 %v1687, %v2069
        %v2071 = vsub.f32 1.0, %v2070
        %v2072 = vmul.f32 %v2069, %v2071
        %v2073 = vadd.f32 %v2069, %v2072
        %vm2074 = vweird.f32 %v1687
        %vm2075 = vweird.f32 %v2069
        %vm2076 = vmor %vm2074, %vm2075
        %v2077 = vsel %vm2076, %v2069, %v2073
        %v2078 = vand.u32 2147483647, %v1687
        %vm2079 = vcmp.eq.f32.partialorder %v2078, 8.507059e+37
        %v2080 = vand.u32 %v1687, 2147483648
        %v2081 = vor.u32 1.1754944e-38, %v2080
        %v2082 = vsel %vm2079, %v2081, %v2077
        %v2083 = vmul.f32 1.0, %v2082
        %v2084 = vrcp.pop %v1690
        %v2085 = vmul.f32 %v1690, %v2084
        %v2086 = vsub.f32 1.0, %v2085
        %v2087 = vmul.f32 %v2084, %v2086
        %v2088 = vadd.f32 %v2084, %v2087
        %vm2089 = vweird.f32 %v1690
        %vm2090 = vweird.f32 %v2084
        %vm2091 = vmor %vm2089, %vm2090
        %v2092 = vsel %vm2091, %v2084, %v2088
        %v2093 = vand.u32 2147483647, %v1690
        %vm2094 = vcmp.eq.f32.partialorder %v2093, 8.507059e+37
        %v2095 = vand.u32 %v1690, 2147483648
        %v2096 = vor.u32 1.1754944e-38, %v2095
        %v2097 = vsel %vm2094, %v2096, %v2092
        %v2098 = vmul.f32 1.0, %v2097
        %v2099 = vrcp.pop %v1693
        %v2100 = vmul.f32 %v1693, %v2099
        %v2101 = vsub.f32 1.0, %v2100
        %v2102 = vmul.f32 %v2099, %v2101
        %v2103 = vadd.f32 %v2099, %v2102
        %vm2104 = vweird.f32 %v1693
        %vm2105 = vweird.f32 %v2099
        %vm2106 = vmor %vm2104, %vm2105
        %v2107 = vsel %vm2106, %v2099, %v2103
        %v2108 = vand.u32 2147483647, %v1693
        %vm2109 = vcmp.eq.f32.partialorder %v2108, 8.507059e+37
        %v2110 = vand.u32 %v1693, 2147483648
        %v2111 = vor.u32 1.1754944e-38, %v2110
        %v2112 = vsel %vm2109, %v2111, %v2107
        %v2113 = vmul.f32 1.0, %v2112
        %v2114 = vrcp.pop %v1696
        %v2115 = vmul.f32 %v1696, %v2114
        %v2116 = vsub.f32 1.0, %v2115
        %v2117 = vmul.f32 %v2114, %v2116
        %v2118 = vadd.f32 %v2114, %v2117
        %vm2119 = vweird.f32 %v1696
        %vm2120 = vweird.f32 %v2114
        %vm2121 = vmor %vm2119, %vm2120
        %v2122 = vsel %vm2121, %v2114, %v2118
        %v2123 = vand.u32 2147483647, %v1696
        %vm2124 = vcmp.eq.f32.partialorder %v2123, 8.507059e+37
        %v2125 = vand.u32 %v1696, 2147483648
        %v2126 = vor.u32 1.1754944e-38, %v2125
        %v2127 = vsel %vm2124, %v2126, %v2122
        %v2128 = vmul.f32 1.0, %v2127
        %v2129 = vrcp.pop %v1699
        %v2130 = vmul.f32 %v1699, %v2129
        %v2131 = vsub.f32 1.0, %v2130
        %v2132 = vmul.f32 %v2129, %v2131
        %v2133 = vadd.f32 %v2129, %v2132
        %vm2134 = vweird.f32 %v1699
        %vm2135 = vweird.f32 %v2129
        %vm2136 = vmor %vm2134, %vm2135
        %v2137 = vsel %vm2136, %v2129, %v2133
        %v2138 = vand.u32 2147483647, %v1699
        %vm2139 = vcmp.eq.f32.partialorder %v2138, 8.507059e+37
        %v2140 = vand.u32 %v1699, 2147483648
        %v2141 = vor.u32 1.1754944e-38, %v2140
        %v2142 = vsel %vm2139, %v2141, %v2137
        %v2143 = vmul.f32 1.0, %v2142
        %v2144 = vrcp.pop %v1702
        %v2145 = vmul.f32 %v1702, %v2144
        %v2146 = vsub.f32 1.0, %v2145
        %v2147 = vmul.f32 %v2144, %v2146
        %v2148 = vadd.f32 %v2144, %v2147
        %vm2149 = vweird.f32 %v1702
        %vm2150 = vweird.f32 %v2144
        %vm2151 = vmor %vm2149, %vm2150
        %v2152 = vsel %vm2151, %v2144, %v2148
        %v2153 = vand.u32 2147483647, %v1702
        %vm2154 = vcmp.eq.f32.partialorder %v2153, 8.507059e+37
        %v2155 = vand.u32 %v1702, 2147483648
        %v2156 = vor.u32 1.1754944e-38, %v2155
        %v2157 = vsel %vm2154, %v2156, %v2152
        %v2158 = vmul.f32 1.0, %v2157
        %v2159 = vrcp.pop %v1705
        %v2160 = vmul.f32 %v1705, %v2159
        %v2161 = vsub.f32 1.0, %v2160
        %v2162 = vmul.f32 %v2159, %v2161
        %v2163 = vadd.f32 %v2159, %v2162
        %vm2164 = vweird.f32 %v1705
        %vm2165 = vweird.f32 %v2159
        %vm2166 = vmor %vm2164, %vm2165
        %v2167 = vsel %vm2166, %v2159, %v2163
        %v2168 = vand.u32 2147483647, %v1705
        %vm2169 = vcmp.eq.f32.partialorder %v2168, 8.507059e+37
        %v2170 = vand.u32 %v1705, 2147483648
        %v2171 = vor.u32 1.1754944e-38, %v2170
        %v2172 = vsel %vm2169, %v2171, %v2167
        %v2173 = vmul.f32 1.0, %v2172
        %v2174 = vrcp.pop %v1708
        %v2175 = vmul.f32 %v1708, %v2174
        %v2176 = vsub.f32 1.0, %v2175
        %v2177 = vmul.f32 %v2174, %v2176
        %v2178 = vadd.f32 %v2174, %v2177
        %vm2179 = vweird.f32 %v1708
        %vm2180 = vweird.f32 %v2174
        %vm2181 = vmor %vm2179, %vm2180
        %v2182 = vsel %vm2181, %v2174, %v2178
        %v2183 = vand.u32 2147483647, %v1708
        %vm2184 = vcmp.eq.f32.partialorder %v2183, 8.507059e+37
        %v2185 = vand.u32 %v1708, 2147483648
        %v2186 = vor.u32 1.1754944e-38, %v2185
        %v2187 = vsel %vm2184, %v2186, %v2182
        %v2188 = vmul.f32 1.0, %v2187
        %v2189 = vmul.f32 %v1486, %v1723
        %v2190 = vmul.f32 %v1488, %v1723
        %v2191 = vmul.f32 %v1490, %v1738
        %v2192 = vmul.f32 %v1492, %v1738
        %v2193 = vmul.f32 %v1494, %v1753
        %v2194 = vmul.f32 %v1496, %v1753
        %v2195 = vmul.f32 %v1498, %v1768
        %v2196 = vmul.f32 %v1500, %v1768
        %v2197 = vmul.f32 %v1502, %v1783
        %v2198 = vmul.f32 %v1504, %v1783
        %v2199 = vmul.f32 %v1506, %v1798
        %v2200 = vmul.f32 %v1508, %v1798
        %v2201 = vmul.f32 %v1510, %v1813
        %v2202 = vmul.f32 %v1512, %v1813
        %v2203 = vmul.f32 %v1514, %v1828
        %v2204 = vmul.f32 %v1516, %v1828
        %v2205 = vmul.f32 %v1518, %v1843
        %v2206 = vmul.f32 %v1520, %v1843
        %v2207 = vmul.f32 %v1522, %v1858
        %v2208 = vmul.f32 %v1524, %v1858
        %v2209 = vmul.f32 %v1526, %v1873
        %v2210 = vmul.f32 %v1528, %v1873
        %v2211 = vmul.f32 %v1530, %v1888
        %v2212 = vmul.f32 %v1532, %v1888
        %v2213 = vmul.f32 %v1534, %v1903
        %v2214 = vmul.f32 %v1536, %v1903
        %v2215 = vmul.f32 %v1538, %v1918
        %v2216 = vmul.f32 %v1540, %v1918
        %v2217 = vmul.f32 %v1542, %v1933
        %v2218 = vmul.f32 %v1544, %v1933
        %v2219 = vmul.f32 %v1546, %v1948
        %v2220 = vmul.f32 %v1548, %v1948
        %v2221 = vmul.f32 %v1550, %v1963
        %v2222 = vmul.f32 %v1552, %v1963
        %v2223 = vmul.f32 %v1554, %v1978
        %v2224 = vmul.f32 %v1556, %v1978
        %v2225 = vmul.f32 %v1558, %v1993
        %v2226 = vmul.f32 %v1560, %v1993
        %v2227 = vmul.f32 %v1562, %v2008
        %v2228 = vmul.f32 %v1564, %v2008
        %v2229 = vmul.f32 %v1566, %v2023
        %v2230 = vmul.f32 %v1568, %v2023
        %v2231 = vmul.f32 %v1570, %v2038
        %v2232 = vmul.f32 %v1572, %v2038
        %v2233 = vmul.f32 %v1574, %v2053
        %v2234 = vmul.f32 %v1576, %v2053
        %v2235 = vmul.f32 %v1578, %v2068
        %v2236 = vmul.f32 %v1580, %v2068
        %v2237 = vmul.f32 %v1582, %v2083
        %v2238 = vmul.f32 %v1584, %v2083
        %v2239 = vmul.f32 %v1586, %v2098
        %v2240 = vmul.f32 %v1588, %v2098
        %v2241 = vmul.f32 %v1590, %v2113
        %v2242 = vmul.f32 %v1592, %v2113
        %v2243 = vmul.f32 %v1594, %v2128
        %v2244 = vmul.f32 %v1596, %v2128
        %v2245 = vmul.f32 %v1598, %v2143
        %v2246 = vmul.f32 %v1600, %v2143
        %v2247 = vmul.f32 %v1602, %v2158
        %v2248 = vmul.f32 %v1604, %v2158
        %v2249 = vmul.f32 %v1606, %v2173
        %v2250 = vmul.f32 %v1608, %v2173
        %v2251 = vmul.f32 %v1610, %v2188
        %v2252 = vmul.f32 %v1612, %v2188
        %v2253 = vpack.c.bf16 %v2191, %v2189
        %v2254 = vpack.c.bf16 %v2192, %v2190
        %v2255 = vpack.c.bf16 %v2195, %v2193
        %v2256 = vpack.c.bf16 %v2196, %v2194
        %v2257 = vpack.c.bf16 %v2199, %v2197
        %v2258 = vpack.c.bf16 %v2200, %v2198
        %v2259 = vpack.c.bf16 %v2203, %v2201
        %v2260 = vpack.c.bf16 %v2204, %v2202
        %v2261 = vpack.c.bf16 %v2207, %v2205
        %v2262 = vpack.c.bf16 %v2208, %v2206
        %v2263 = vpack.c.bf16 %v2211, %v2209
        %v2264 = vpack.c.bf16 %v2212, %v2210
        %v2265 = vpack.c.bf16 %v2215, %v2213
        %v2266 = vpack.c.bf16 %v2216, %v2214
        %v2267 = vpack.c.bf16 %v2219, %v2217
        %v2268 = vpack.c.bf16 %v2220, %v2218
        %v2269 = vpack.c.bf16 %v2223, %v2221
        %v2270 = vpack.c.bf16 %v2224, %v2222
        %v2271 = vpack.c.bf16 %v2227, %v2225
        %v2272 = vpack.c.bf16 %v2228, %v2226
        %v2273 = vpack.c.bf16 %v2231, %v2229
        %v2274 = vpack.c.bf16 %v2232, %v2230
        %v2275 = vpack.c.bf16 %v2235, %v2233
        %v2276 = vpack.c.bf16 %v2236, %v2234
        %v2277 = vpack.c.bf16 %v2239, %v2237
        %v2278 = vpack.c.bf16 %v2240, %v2238
        %v2279 = vpack.c.bf16 %v2243, %v2241
        %v2280 = vpack.c.bf16 %v2244, %v2242
        %v2281 = vpack.c.bf16 %v2247, %v2245
        %v2282 = vpack.c.bf16 %v2248, %v2246
        %v2283 = vpack.c.bf16 %v2251, %v2249
        %v2284 = vpack.c.bf16 %v2252, %v2250
        %v2289 = vunpack.c.l.b16 %v994
        %v2290 = vunpack.c.h.b16 %v994
        %v2291 = vunpack.c.l.b16 %v995
        %v2292 = vunpack.c.h.b16 %v995
        %v2293 = vunpack.c.l.b16 %v996
        %v2294 = vunpack.c.h.b16 %v996
        %v2295 = vunpack.c.l.b16 %v997
        %v2296 = vunpack.c.h.b16 %v997
        %v2297 = vpack.c.b16 %v2291, %v2289
        %v2298 = vpack.c.b16 %v2292, %v2290
        %v2299 = vpack.c.b16 %v2295, %v2293
        %v2300 = vpack.c.b16 %v2296, %v2294
        %2305 = vmatpush.bf16.xpose.msra.mxu0 %v2267
        %2306 = vmatpush.bf16.xpose.msra.mxu0 %v2265
        %2307 = vmatpush.bf16.xpose.msra.mxu0 %v2263
        %2308 = vmatpush.bf16.xpose.msra.mxu0 %v2261
        %2309 = vmatpush.bf16.xpose.msra.mxu0 %v2259
        %2310 = vmatpush.bf16.xpose.msra.mxu0 %v2257
        %2311 = vmatpush.bf16.xpose.msra.mxu0 %v2255
        %2312 = vmatpush.bf16.xpose.msra.mxu0 %v2253
        %2313 = vmatmul.bf16.gmra.mxu0 %v2297
        %v2314 = vpop.f32.mrf.mxu0
        %v2315 = vadd.f32 0.0, %v2314
        %v2316 = vpop.f32.mrf.mxu0
        %v2317 = vadd.f32 0.0, %v2316
        %2318 = vmatmul.bf16.gmra.mxu0 %v2299
        %v2319 = vpop.f32.mrf.mxu0
        %v2320 = vadd.f32 0.0, %v2319
        %v2321 = vpop.f32.mrf.mxu0
        %v2322 = vadd.f32 0.0, %v2321
        %2323 = vdwg.mxu0
        %2324 = vmatpush.bf16.xpose.msra.mxu0 %v2268
        %2325 = vmatpush.bf16.xpose.msra.mxu0 %v2266
        %2326 = vmatpush.bf16.xpose.msra.mxu0 %v2264
        %2327 = vmatpush.bf16.xpose.msra.mxu0 %v2262
        %2328 = vmatpush.bf16.xpose.msra.mxu0 %v2260
        %2329 = vmatpush.bf16.xpose.msra.mxu0 %v2258
        %2330 = vmatpush.bf16.xpose.msra.mxu0 %v2256
        %2331 = vmatpush.bf16.xpose.msra.mxu0 %v2254
        %2332 = vmatmul.bf16.gmra.mxu0 %v2298
        %v2333 = vpop.f32.mrf.mxu0
        %v2334 = vadd.f32 %v2315, %v2333
        %v2335 = vpop.f32.mrf.mxu0
        %v2336 = vadd.f32 %v2317, %v2335
        %2337 = vmatmul.bf16.gmra.mxu0 %v2300
        %v2338 = vpop.f32.mrf.mxu0
        %v2339 = vadd.f32 %v2320, %v2338
        %v2340 = vpop.f32.mrf.mxu0
        %v2341 = vadd.f32 %v2322, %v2340
        %2342 = vdwg.mxu0
        %2343 = vmatpush.bf16.xpose.msra.mxu0 %v2283
        %2344 = vmatpush.bf16.xpose.msra.mxu0 %v2281
        %2345 = vmatpush.bf16.xpose.msra.mxu0 %v2279
        %2346 = vmatpush.bf16.xpose.msra.mxu0 %v2277
        %2347 = vmatpush.bf16.xpose.msra.mxu0 %v2275
        %2348 = vmatpush.bf16.xpose.msra.mxu0 %v2273
        %2349 = vmatpush.bf16.xpose.msra.mxu0 %v2271
        %2350 = vmatpush.bf16.xpose.msra.mxu0 %v2269
        %2351 = vmatmul.bf16.gmra.mxu0 %v2297
        %v2352 = vpop.f32.mrf.mxu0
        %v2353 = vadd.f32 0.0, %v2352
        %v2354 = vpop.f32.mrf.mxu0
        %v2355 = vadd.f32 0.0, %v2354
        %2356 = vmatmul.bf16.gmra.mxu0 %v2299
        %v2357 = vpop.f32.mrf.mxu0
        %v2358 = vadd.f32 0.0, %v2357
        %v2359 = vpop.f32.mrf.mxu0
        %v2360 = vadd.f32 0.0, %v2359
        %2361 = vdwg.mxu0
        %2362 = vmatpush.bf16.xpose.msra.mxu0 %v2284
        %2363 = vmatpush.bf16.xpose.msra.mxu0 %v2282
        %2364 = vmatpush.bf16.xpose.msra.mxu0 %v2280
        %2365 = vmatpush.bf16.xpose.msra.mxu0 %v2278
        %2366 = vmatpush.bf16.xpose.msra.mxu0 %v2276
        %2367 = vmatpush.bf16.xpose.msra.mxu0 %v2274
        %2368 = vmatpush.bf16.xpose.msra.mxu0 %v2272
        %2369 = vmatpush.bf16.xpose.msra.mxu0 %v2270
        %2370 = vmatmul.bf16.gmra.mxu0 %v2298
        %v2371 = vpop.f32.mrf.mxu0
        %v2372 = vadd.f32 %v2353, %v2371
        %v2373 = vpop.f32.mrf.mxu0
        %v2374 = vadd.f32 %v2355, %v2373
        %2375 = vmatmul.bf16.gmra.mxu0 %v2300
        %v2376 = vpop.f32.mrf.mxu0
        %v2377 = vadd.f32 %v2358, %v2376
        %v2378 = vpop.f32.mrf.mxu0
        %v2379 = vadd.f32 %v2360, %v2378
        %2380 = vdwg.mxu0
        %v2381 = vld [vmem:[%s6] sm:$0xf]
        %v2382 = vld [vmem:[%s6 + $0x4] sm:$0xf]
        %v2383 = vld [vmem:[%s6 + $0x8] sm:$0xf]
        %v2384 = vld [vmem:[%s6 + $0xc] sm:$0xf]
        %v2385 = vpack.c.bf16 %v2336, %v2334
        %v2386 = vpack.c.bf16 %v2374, %v2372
        %v2387 = vpack.c.bf16 %v2341, %v2339
        %v2388 = vpack.c.bf16 %v2379, %v2377
        %v2389 = vld [vmem:[%s7] sm:$0xff]
        %v2390 = vld [vmem:[%s7 + $0x8] sm:$0xff]
        %v2391 = vld [vmem:[%s7 + $0x10] sm:$0xff]
        %v2392 = vld [vmem:[%s7 + $0x18] sm:$0xff]
        %2394 = vset.pattern.permute.xlu0 0
        %2395 = vperm.xlu0 %2394, %v2389
        %v2396 = vpop.permute.xlu0 %2395
        %2399 = vset.pattern.permute.xlu0 0
        %2400 = vperm.xlu0 %2399, %v2390
        %v2401 = vpop.permute.xlu0 %2400
        %2404 = vset.pattern.permute.xlu0 0
        %2405 = vperm.xlu0 %2404, %v2391
        %v2406 = vpop.permute.xlu0 %2405
        %2409 = vset.pattern.permute.xlu0 0
        %2410 = vperm.xlu0 %2409, %v2392
        %v2411 = vpop.permute.xlu0 %2410
        %v2417 = vunpack.c.l.b16 %v2381
        %v2418 = vunpack.c.l.b16 %v2382
        %v2419 = vunpack.c.l.b16 %v2383
        %v2420 = vunpack.c.l.b16 %v2384
        %v2421 = vpack.c.b16 %v2418, %v2417
        %v2422 = vpack.c.b16 %v2420, %v2419
        %v2424 = vsel %vm1098, %v2421, 0
        %v2427 = vsel %vm1098, %v2422, 0
        %2429 = vmatpush.bf16.msra.mxu0 0
        %2430 = vmatpush.bf16.msra.mxu0 0
        %2431 = vmatpush.bf16.msra.mxu0 0
        %2432 = vmatpush.bf16.msra.mxu0 0
        %2433 = vmatpush.bf16.msra.mxu0 0
        %2434 = vmatpush.bf16.msra.mxu0 0
        %2435 = vmatpush.bf16.msra.mxu0 %v2387
        %2436 = vmatpush.bf16.msra.mxu0 %v2385
        %2437 = vmatmul.bf16.gmra.mxu0 %v2424
        %v2438 = vpop.f32.mrf.mxu0
        %v2439 = vadd.f32 %v2396, %v2438
        %v2440 = vpop.f32.mrf.mxu0
        %v2441 = vadd.f32 %v2401, %v2440
        %2442 = vmatmul.bf16.gmra.mxu0 %v2427
        %v2443 = vpop.f32.mrf.mxu0
        %v2444 = vadd.f32 %v2406, %v2443
        %v2445 = vpop.f32.mrf.mxu0
        %v2446 = vadd.f32 %v2411, %v2445
        %2447 = vdwg.mxu0
        %2448 = vmatpush.bf16.msra.mxu0 0
        %2449 = vmatpush.bf16.msra.mxu0 0
        %2450 = vmatpush.bf16.msra.mxu0 0
        %2451 = vmatpush.bf16.msra.mxu0 0
        %2452 = vmatpush.bf16.msra.mxu0 0
        %2453 = vmatpush.bf16.msra.mxu0 0
        %2454 = vmatpush.bf16.msra.mxu0 %v2388
        %2455 = vmatpush.bf16.msra.mxu0 %v2386
        %2456 = vmatmul.bf16.gmra.mxu0 %v2424
        %v2457 = vpop.f32.mrf.mxu0
        %v2458 = vadd.f32 %v2396, %v2457
        %v2459 = vpop.f32.mrf.mxu0
        %v2460 = vadd.f32 %v2401, %v2459
        %2461 = vmatmul.bf16.gmra.mxu0 %v2427
        %v2462 = vpop.f32.mrf.mxu0
        %v2463 = vadd.f32 %v2406, %v2462
        %v2464 = vpop.f32.mrf.mxu0
        %v2465 = vadd.f32 %v2411, %v2464
        %2466 = vdwg.mxu0
        %s2467 = sshra.s32 %s953, 7
        %s2468 = sand.u32 %s953, 127
        %s2469 = smul.addr %s2467, 8
        %s2470 = scalar_lea.vmem %s317, %s2469
        %v2471 = vld [vmem:[%s2470] sm:$0xff]
        %v2472 = vld [vmem:[%s2470 + $0x8] sm:$0xff]
        %v2473 = vld [vmem:[%s2470 + $0x10] sm:$0xff]
        %v2474 = vld [vmem:[%s2470 + $0x18] sm:$0xff]
        %v2475 = vld [vmem:[%s2470 + $0x20] sm:$0xff]
        %v2476 = vld [vmem:[%s2470 + $0x28] sm:$0xff]
        %v2477 = vld [vmem:[%s2470 + $0x30] sm:$0xff]
        %v2478 = vld [vmem:[%s2470 + $0x38] sm:$0xff]
        %v2479 = vadd.f32 %v2471, %v2439
        %v2480 = vadd.f32 %v2472, %v2458
        %v2481 = vadd.f32 %v2473, %v2441
        %v2482 = vadd.f32 %v2474, %v2460
        %v2483 = vadd.f32 %v2475, %v2444
        %v2484 = vadd.f32 %v2476, %v2463
        %v2485 = vadd.f32 %v2477, %v2446
        %v2486 = vadd.f32 %v2478, %v2465
        %2487 = vst [vmem:[%s312] sm:$0xff] %v2479
        %2488 = vst [vmem:[%s312 + $0x8] sm:$0xff] %v2480
        %2489 = vst [vmem:[%s312 + $0x10] sm:$0xff] %v2481
        %2490 = vst [vmem:[%s312 + $0x18] sm:$0xff] %v2482
        %2491 = vst [vmem:[%s312 + $0x20] sm:$0xff] %v2483
        %2492 = vst [vmem:[%s312 + $0x28] sm:$0xff] %v2484
        %2493 = vst [vmem:[%s312 + $0x30] sm:$0xff] %v2485
        %2494 = vst [vmem:[%s312 + $0x38] sm:$0xff] %v2486
        %s2495 = sand.u32 %s217, 1
        %s2496 = scalar_lea.sflag [#allocation5], %s2495
        %s2497 = sand.u32 %s217, 1
        %s2498 = smul.addr %s2497, 64
        %s2499 = scalar_lea.vmem [#allocation4], %s2498
        // Predicated region
        $region57: #{tpu_custom_call.1} parent=51 // pred_check
          %p2500 = pneg %p227
        $region58: #{tpu_custom_call.1} parent=51 // pred_check_branch
          %2502 = sbr.rel (%p2500) target = $region60
        $region59: #{tpu_custom_call.1} parent=51 // pred_region
          %s2503 = smul.u32 2, %s27
          %2505 = vsyncadd %s2496, 0
          %s2506 = smul.addr %s26, 8
          %s2507 = sadd.s32 %s2503, %s2506
          %s2508 = smul.addr %s2507, 8
          %s2509 = scalar_lea.hbm %s8, %s2508
          %s2510 = sshll.u32 %s2499, 4
          %s2511 = int_to_ptr.vmem [resolvable:$true] %s2510
          %s2512 = sshll.u32 %s2509, 4
          %s2513 = int_to_ptr.hbm [resolvable:$true] %s2512
          %2518 = dma.vmem_to_hbm [thread:$0]  %s2511, 1024, %s2513, %s2496, 256, 256, 16
        $region60: #{tpu_custom_call.1} parent=51 // pred_fallthru
          _
      $region52: #{tpu_custom_call.1} parent=5 // pred_fallthru
        _
      %p2519 = scmp.le.s32.totalorder 2, %s17
      // Predicated region
      $region61: #{tpu_custom_call.1} parent=5 // pred_check
        %p2520 = pneg %p2519
      $region62: #{tpu_custom_call.1} parent=5 // pred_check_branch
        %2522 = sbr.rel (%p2520) target = $region64
      $region63: #{tpu_custom_call.1} parent=5 // pred_region
        %s2523 = ssub.s32 %s17, 2
        // Predicated region
        $region65: #{tpu_custom_call.1} parent=63 // pred_check
          %p2524 = pneg %p233
        $region66: #{tpu_custom_call.1} parent=63 // pred_check_branch
          %2526 = sbr.rel (%p2524) target = $region68
        $region67: #{tpu_custom_call.1} parent=63 // pred_region
          %s2527 = sand.u32 %s218, 1
          %s2528 = scalar_lea.sflag [#allocation5], %s2527
          %s2529 = sand.u32 %s218, 1
          %s2530 = smul.addr %s2529, 64
          %s2531 = scalar_lea.vmem [#allocation4], %s2530
          %2533 = dma.done %s2528, 1024
        $region68: #{tpu_custom_call.1} parent=63 // pred_fallthru
          _
      $region64: #{tpu_custom_call.1} parent=5 // pred_fallthru
        _
    $region6: #{tpu_custom_call.1} parent=1 // loop_footer
      %s21 = sadd.s32 1, %s17
    $region7: #{tpu_custom_call.1} parent=1 // loop_footer_branch
      %16 = sbr.rel target = $region3
    $region8: #{tpu_custom_call.1} parent=1 // loop_exit
      _
    %2534 = vsyncpa [#allocation5], 1
    %s2535 = scalar_lea.sflag [#allocation5], 1
    %2536 = vsyncpa %s2535, 1

</llo_original>
